<compile_context>
chip_gen: v5e
topology: v5e:2x2
jax: 0.10.0
libtpu: 0.0.40
codegen_flags: <defaults>
</compile_context>

<pallas_src>
import functools

import jax
import jax.numpy as jnp
import numpy as np
from jax.experimental import pallas as pl
from jax.experimental.pallas import tpu as pltpu

NEG_BIG = -3.0e38   # stands in for PyTorch's -inf max-pool padding; safe only
                    # because every 3x3 window contains the always-valid center
                    # tap, so the sentinel can never be the window max.
MXU_MIN_CH = 16     # per-image channel count at which the 1x1 convs move to
                    # the MXU instead of unrolled VPU FMAs.


def _and_masks(m0, m1):
    if m0 is None:
        return m1
    if m1 is None:
        return m0
    return m0 & m1


def _pw_conv(x, w_ref, *, use_mxu):
    """1x1 conv: (Cout, Cin) weights applied to (Cin, HW) activations."""
    if use_mxu:
        # MXU path (vector-extended slot is otherwise idle in this kernel).
        return jnp.dot(w_ref[...], x, preferred_element_type=jnp.float32,
                       precision=jax.lax.Precision.HIGHEST)
    # VPU path for tiny channel counts: two interleaved accumulation chains to
    # shorten the serial FMA dependence.
    n_in = x.shape[0]
    acc0 = x[0:1, :] * w_ref[:, 0:1]
    acc1 = None
    for c in range(1, n_in):
        t = x[c:c + 1, :] * w_ref[:, c:c + 1]
        if c % 2 == 1:
            acc1 = t if acc1 is None else acc1 + t
        else:
            acc0 = acc0 + t
    return acc0 if acc1 is None else acc0 + acc1


def spatial_attn_kernel(x_ref, coli_ref, rowi_ref,
                        w_in_ref, w_dw_ref, w_out_ref,
                        s_in_ref, b_in_ref, s_br_ref, b_br_ref,
                        s_out_ref, b_out_ref,
                        o_ref, pad_ref, *, H, W, halo, use_mxu_in, use_mxu_out):
    Cm = pad_ref.shape[0]          # NB * Cmid (packed mid channels)
    HW = H * W
    base = halo * W                # flat start of the interior

    # ---- pointwise_in: 1x1 conv (block-diag over NB packed images) + BN + SiLU
    x = x_ref[...].astype(jnp.float32)                     # (NB*Cin, HW)
    a = _pw_conv(x, w_in_ref, use_mxu=use_mxu_in)          # (NB*Cmid, HW)
    a = a * s_in_ref[...] + b_in_ref[...]
    a = a * jax.nn.sigmoid(a)                              # SiLU

    # ---- padded scratch: zero the 4 halo rows adjacent to the interior on
    # each side (every row a dilation<=3 tap, including its column wrap, can
    # touch), then write the interior.  Kept per-step: a pl.when(pid==0)
    # "zero once" would read stale VMEM on a megacore core whose first block
    # index is not 0.  The stores are tiny (2 x (Cm, 4W)).
    ring = jnp.zeros((Cm, 4 * W), jnp.float32)
    pad_ref[:, (halo - 4) * W:halo * W] = ring
    pad_ref[:, (halo + H) * W:(halo + H + 4) * W] = ring
    pad_ref[:, base:base + HW] = a

    # ---- hoisted boundary masks (computed once, reused by all 27 taps) ------
    coli = coli_ref[...]                                   # (1, HW) int32
    rowi = rowi_ref[...]
    neg = jnp.float32(NEG_BIG)

    col_ok = {0: None}
    for dx in (1, 2, 3):
        col_ok[dx] = coli < (W - dx)
        col_ok[-dx] = coli >= dx
    row_ok = {0: None, 1: rowi < (H - 1), -1: rowi >= 1}
    mp_ok = {(dy, dx): _and_masks(col_ok[dx], row_ok[dy])
             for dy in (-1, 0, 1) for dx in (-1, 0, 1) if (dy, dx) != (0, 0)}

    ssum = jnp.zeros((Cm, HW), jnp.float32)     # sum of the three SiLU'd branches
    mp = jnp.full((Cm, HW), neg, jnp.float32)   # max-pool accumulator
    ap = jnp.zeros((Cm, HW), jnp.float32)       # avg-pool accumulator

    for k in range(3):                          # depthwise branch, dilation d = k+1
        d = k + 1
        br = jnp.zeros((Cm, HW), jnp.float32)
        for ty in range(3):
            for tx in range(3):
                dy = (ty - 1) * d
                dx = (tx - 1) * d
                off = base + dy * W + dx
                raw = pad_ref[:, off:off + HW]          # shifted lane-dense view of `a`
                cmask = col_ok[dx]
                # zero padding in W via mask; zero padding in H via halo rows
                tap = raw if cmask is None else jnp.where(cmask, raw, 0.0)

                ti = k * 9 + ty * 3 + tx
                br = br + tap * w_dw_ref[:, ti:ti + 1]

                if k == 0:                              # d == 1 taps shared with pools
                    ap = ap + tap
                    if dy == 0 and dx == 0:
                        mp = jnp.maximum(mp, raw)
                    else:
                        mp = jnp.maximum(mp, jnp.where(mp_ok[(dy, dx)], raw, neg))

        br = br * s_br_ref[:, k:k + 1] + b_br_ref[:, k:k + 1]
        br = br * jax.nn.sigmoid(br)            # SiLU
        ssum = ssum + br

    s = ssum + mp + ap * (1.0 / 9.0)            # avg pool: count_include_pad=True

    # ---- pointwise_out: 1x1 conv + BN + SiLU, then sigmoid ------------------
    out = _pw_conv(s, w_out_ref, use_mxu=use_mxu_out)      # (NB*Cin, HW)
    out = out * s_out_ref[...] + b_out_ref[...]
    out = out * jax.nn.sigmoid(out)             # SiLU
    attn = jax.nn.sigmoid(out)

    # Re-read x (block is resident in VMEM) instead of keeping the f32 copy
    # loaded for conv_in live across the whole tap loop.
    xe = x_ref[...].astype(jnp.float32)
    o_ref[...] = ((attn + 1.0) * xe).astype(o_ref.dtype)   # attn * x + x


def _pick_halo(W):
    # >= 4 halo rows required: max dilation 3 plus one row of column-wrap slack
    # (wrapped lanes are masked, but must stay inside the allocation).  When W
    # divides 128, grow the halo so the interior starts lane-tile aligned.
    if W <= 128 and 128 % W == 0:
        return max(4, 128 // W)
    return 4


def _pick_batch_pack(N, Cin, Cmid):
    """Images packed per grid step so the mid activation fills >= 8 f32 sublanes."""
    target = max(1, (8 + Cmid - 1) // Cmid)
    for nb in range(min(target, N), 0, -1):
        if N % nb == 0 and (N // nb == 1 or (nb * Cin) % 8 == 0):
            return nb
    return N   # single grid step: block spans the whole array, always legal


def _vmem_limit_bytes(NB, Cin, Cmid, H, W, halo):
    f32 = 4
    hw = H * W
    io = 2 * 2 * NB * Cin * hw * f32               # double-buffered input + output
    pad = NB * Cmid * (H + 2 * halo) * W * f32     # padded mid-activation scratch
    live = 8 * NB * Cmid * hw * f32                # accumulators the compiler may spill
    need = io + pad + live + (1 << 16)             # + weights / BN / index planes
    return int(min(100 * 2 ** 20, max(16 * 2 ** 20, 2 * need)))


def spatial_attention_pallas(x_rows, p, N, Cin, H, W):
    HW = H * W
    Cmid = p["w_in"].shape[0]
    halo = _pick_halo(W)
    assert halo >= 4, "need >= max_dilation + 1 zeroed halo rows on each side"
    NB = _pick_batch_pack(N, Cin, Cmid)

    pos = jnp.arange(HW, dtype=jnp.int32)
    coli = (pos % W).reshape(1, HW)
    rowi = (pos // W).reshape(1, HW)
    # TODO(synk): when W is a power of two, generate coli/rowi in-kernel with
    # broadcasted_iota + shift/and and drop these two (tiny) inputs.

    # Block-diagonal 1x1 weights / tiled per-channel params for the NB packing.
    eye = jnp.eye(NB, dtype=jnp.float32)
    w_in = jnp.kron(eye, p["w_in"])       # (NB*Cmid, NB*Cin)
    w_out = jnp.kron(eye, p["w_out"])     # (NB*Cin, NB*Cmid)
    w_dw = jnp.tile(p["w_dw"], (NB, 1))   # (NB*Cmid, 27)
    s_in = jnp.tile(p["s_in"], (NB, 1))
    b_in = jnp.tile(p["b_in"], (NB, 1))
    s_br = jnp.tile(p["s_br"], (NB, 1))
    b_br = jnp.tile(p["b_br"], (NB, 1))
    s_out = jnp.tile(p["s_out"], (NB, 1))
    b_out = jnp.tile(p["b_out"], (NB, 1))

    def full(shape):
        return pl.BlockSpec(shape, lambda b, _n=len(shape): (0,) * _n)

    kernel = functools.partial(
        spatial_attn_kernel, H=H, W=W, halo=halo,
        use_mxu_in=(Cin >= MXU_MIN_CH), use_mxu_out=(Cmid >= MXU_MIN_CH))

    # TODO(synk): add a second "parallel" grid axis over row strips for v7x
    # (2 TensorCores, 64 MiB VMEM) once production feature maps need it.
    return pl.pallas_call(
        kernel,
        out_shape=jax.ShapeDtypeStruct((N * Cin, HW), x_rows.dtype),
        grid_spec=pltpu.PrefetchScalarGridSpec(
            num_scalar_prefetch=0,
            grid=(N // NB,),
            in_specs=[
                pl.BlockSpec((NB * Cin, HW), lambda b: (b, 0)),   # NB packed images
                full((1, HW)),                # column index per flattened position
                full((1, HW)),                # row index per flattened position
                full(w_in.shape),             # block-diag 1x1 conv_in
                full(w_dw.shape),             # depthwise taps (3 branches x 9)
                full(w_out.shape),            # block-diag 1x1 conv_out
                full(s_in.shape), full(b_in.shape),     # bn_in scale / bias
                full(s_br.shape), full(b_br.shape),     # branch bn scale / bias
                full(s_out.shape), full(b_out.shape),   # bn_out scale / bias
            ],
            out_specs=pl.BlockSpec((NB * Cin, HW), lambda b: (b, 0)),
            scratch_shapes=[
                # single zero-padded copy of the packed mid activation: halo
                # rows top and bottom; W padding handled by hoisted masks.
                pltpu.VMEM((NB * Cmid, (H + 2 * halo) * W), jnp.float32),
            ],
        ),
        compiler_params=pltpu.CompilerParams(
            dimension_semantics=("parallel",),
            vmem_limit_bytes=_vmem_limit_bytes(NB, Cin, Cmid, H, W, halo),
        ),
    )(x_rows, coli, rowi, w_in, w_dw, w_out,
      s_in, b_in, s_br, b_br, s_out, b_out)


def spatial_attention_forward(x_nchw, p):
    # NCHW kept end-to-end; flattening (N, C, H, W) -> (N*C, H*W) is a free
    # reshape of the contiguous tensor (no HBM transposes).
    N, C, H, W = x_nchw.shape
    y = spatial_attention_pallas(x_nchw.reshape(N * C, H * W), p, N, C, H, W)
    return y.reshape(N, C, H, W)


# ---------------- parameter construction (deterministic, synthetic) ---------
def fold_bn(gamma, beta, mean, var, eps=1e-5):
    scale = gamma / jnp.sqrt(var + eps)
    bias = beta - mean * scale
    return scale, bias


def make_params(key, in_ch, reduction):
    mid_ch = in_ch // reduction
    ks = jax.random.split(key, 8)

    w_in = jax.random.normal(ks[0], (mid_ch, in_ch), jnp.float32) * 0.2
    w_out = jax.random.normal(ks[1], (in_ch, mid_ch), jnp.float32) * 0.2
    # depthwise weights: per mid channel, 3 branches x (3x3) taps -> (mid_ch, 27)
    w_dw = jax.random.normal(ks[2], (mid_ch, 27), jnp.float32) * 0.3

    def bn(k, c):
        k1, k2, k3, k4 = jax.random.split(k, 4)
        gamma = 1.0 + 0.1 * jax.random.normal(k1, (c,), jnp.float32)
        beta = 0.1 * jax.random.normal(k2, (c,), jnp.float32)
        mean = 0.1 * jax.random.normal(k3, (c,), jnp.float32)
        var = 0.5 + jax.random.uniform(k4, (c,), jnp.float32)
        return fold_bn(gamma, beta, mean, var)

    s_in, b_in = bn(ks[3], mid_ch)
    s1, b1 = bn(ks[4], mid_ch)
    s2, b2 = bn(ks[5], mid_ch)
    s3, b3 = bn(ks[6], mid_ch)
    s_out, b_out = bn(ks[7], in_ch)

    return {
        "w_in": w_in, "w_dw": w_dw, "w_out": w_out,
        "s_in": s_in[:, None], "b_in": b_in[:, None],
        "s_br": jnp.stack([s1, s2, s3], axis=1),   # (mid_ch, 3)
        "b_br": jnp.stack([b1, b2, b3], axis=1),
        "s_out": s_out[:, None], "b_out": b_out[:, None],
    }


# ---------------- pure-JAX reference (same math, NCHW) ----------------------
def reference_forward(x, p):
    N, Cin, H, W = x.shape

    def cast(v):
        return v.reshape(1, -1, 1, 1)

    a = jnp.einsum("mc,nchw->nmhw", p["w_in"], x,
                   precision=jax.lax.Precision.HIGHEST)
    a = a * cast(p["s_in"]) + cast(p["b_in"])
    a = a * jax.nn.sigmoid(a)

    pad0 = jnp.pad(a, ((0, 0), (0, 0), (3, 3), (3, 3)))
    padm = jnp.pad(a, ((0, 0), (0, 0), (1, 1), (1, 1)),
                   constant_values=NEG_BIG)

    acc = jnp.zeros_like(a)
    for k in range(3):
        d = k + 1
        br = jnp.zeros_like(a)
        for ty in range(3):
            for tx in range(3):
                oy, ox = 3 + (ty - 1) * d, 3 + (tx - 1) * d
                w = p["w_dw"][:, k * 9 + ty * 3 + tx].reshape(1, -1, 1, 1)
                br = br + pad0[:, :, oy:oy + H, ox:ox + W] * w
        br = (br * p["s_br"][:, k].reshape(1, -1, 1, 1)
              + p["b_br"][:, k].reshape(1, -1, 1, 1))
        br = br * jax.nn.sigmoid(br)
        acc = acc + br

    mp = jnp.full_like(a, NEG_BIG)
    ap = jnp.zeros_like(a)
    for ty in range(3):
        for tx in range(3):
            mp = jnp.maximum(mp, padm[:, :, ty:ty + H, tx:tx + W])
            ap = ap + pad0[:, :, 2 + ty:2 + ty + H, 2 + tx:2 + tx + W]
    ap = ap / 9.0
    s = acc + mp + ap

    out = jnp.einsum("cm,nmhw->nchw", p["w_out"], s,
                     precision=jax.lax.Precision.HIGHEST)
    out = out * cast(p["s_out"]) + cast(p["b_out"])
    out = out * jax.nn.sigmoid(out)
    attn = jax.nn.sigmoid(out)
    return attn * x + x


if __name__ == "__main__":
    key = jax.random.PRNGKey(0)
    k_x, k_p = jax.random.split(key)

    N, in_ch, H, W = 2, 8, 16, 16
    reduction = 2

    x = jax.random.normal(k_x, (N, in_ch, H, W), jnp.float32)  # NCHW like PyTorch
    params = make_params(k_p, in_ch, reduction)

    y = jax.block_until_ready(spatial_attention_forward(x, params))
    y_ref = jax.block_until_ready(reference_forward(x, params))

    assert y.shape == (N, in_ch, H, W)
    np.testing.assert_allclose(np.asarray(y), np.asarray(y_ref),
                               rtol=1e-4, atol=1e-4)
    print("KERNEL_OK")
</pallas_src>

<mosaic_0001>
module attributes {stable_mosaic.version = 11 : i64} {
  func.func @spatial_attn_kernel(%arg0: i32, %arg1: memref<16x256xf32, #tpu.memory_space<vmem>>, %arg2: memref<1x256xi32, #tpu.memory_space<vmem>>, %arg3: memref<1x256xi32, #tpu.memory_space<vmem>>, %arg4: memref<8x16xf32, #tpu.memory_space<vmem>>, %arg5: memref<8x27xf32, #tpu.memory_space<vmem>>, %arg6: memref<16x8xf32, #tpu.memory_space<vmem>>, %arg7: memref<8x1xf32, #tpu.memory_space<vmem>>, %arg8: memref<8x1xf32, #tpu.memory_space<vmem>>, %arg9: memref<8x3xf32, #tpu.memory_space<vmem>>, %arg10: memref<8x3xf32, #tpu.memory_space<vmem>>, %arg11: memref<16x1xf32, #tpu.memory_space<vmem>>, %arg12: memref<16x1xf32, #tpu.memory_space<vmem>>, %arg13: memref<16x256xf32, #tpu.memory_space<vmem>>, %arg14: memref<8x512xf32, #tpu.memory_space<vmem>>) attributes {dimension_semantics = [#tpu.dimension_semantics<parallel>], iteration_bounds = array<i64: 1>, scalar_prefetch = 0 : i64, scratch_operands = 1 : i64, tpu.core_type = #tpu.core_type<tc>, window_params = [{transform_indices = @transform_0, window_bounds = array<i64: 16, 256>}, {pipeline_mode = #tpu.pipeline_mode<synchronous>, transform_indices = @transform_1, window_bounds = array<i64: 1, 256>}, {pipeline_mode = #tpu.pipeline_mode<synchronous>, transform_indices = @transform_2, window_bounds = array<i64: 1, 256>}, {pipeline_mode = #tpu.pipeline_mode<synchronous>, transform_indices = @transform_3, window_bounds = array<i64: 8, 16>}, {pipeline_mode = #tpu.pipeline_mode<synchronous>, transform_indices = @transform_4, window_bounds = array<i64: 8, 27>}, {pipeline_mode = #tpu.pipeline_mode<synchronous>, transform_indices = @transform_5, window_bounds = array<i64: 16, 8>}, {pipeline_mode = #tpu.pipeline_mode<synchronous>, transform_indices = @transform_6, window_bounds = array<i64: 8, 1>}, {pipeline_mode = #tpu.pipeline_mode<synchronous>, transform_indices = @transform_7, window_bounds = array<i64: 8, 1>}, {pipeline_mode = #tpu.pipeline_mode<synchronous>, transform_indices = @transform_8, window_bounds = array<i64: 8, 3>}, {pipeline_mode = #tpu.pipeline_mode<synchronous>, transform_indices = @transform_9, window_bounds = array<i64: 8, 3>}, {pipeline_mode = #tpu.pipeline_mode<synchronous>, transform_indices = @transform_10, window_bounds = array<i64: 16, 1>}, {pipeline_mode = #tpu.pipeline_mode<synchronous>, transform_indices = @transform_11, window_bounds = array<i64: 16, 1>}, {transform_indices = @transform_12, window_bounds = array<i64: 16, 256>}]} {
    %c0 = arith.constant 0 : index
    %c0_0 = arith.constant 0 : index
    %0 = vector.load %arg1[%c0, %c0_0] : memref<16x256xf32, #tpu.memory_space<vmem>>, vector<16x256xf32>
    %1 = vector.extract_strided_slice %0 {offsets = [0, 0], sizes = [1, 256], strides = [1, 1]} : vector<16x256xf32> to vector<1x256xf32>
    %c0_1 = arith.constant 0 : index
    %c0_2 = arith.constant 0 : index
    %2 = vector.load %arg4[%c0_1, %c0_2] : memref<8x16xf32, #tpu.memory_space<vmem>>, vector<8x1xf32>
    %3 = vector.broadcast %1 : vector<1x256xf32> to vector<8x256xf32>
    %4 = vector.broadcast %2 : vector<8x1xf32> to vector<8x256xf32>
    %5 = arith.mulf %3, %4 : vector<8x256xf32>
    %6 = vector.extract_strided_slice %0 {offsets = [1, 0], sizes = [1, 256], strides = [1, 1]} : vector<16x256xf32> to vector<1x256xf32>
    %c0_3 = arith.constant 0 : index
    %c1 = arith.constant 1 : index
    %7 = vector.load %arg4[%c0_3, %c1] : memref<8x16xf32, #tpu.memory_space<vmem>>, vector<8x1xf32>
    %8 = vector.broadcast %6 : vector<1x256xf32> to vector<8x256xf32>
    %9 = vector.broadcast %7 : vector<8x1xf32> to vector<8x256xf32>
    %10 = arith.mulf %8, %9 : vector<8x256xf32>
    %11 = vector.extract_strided_slice %0 {offsets = [2, 0], sizes = [1, 256], strides = [1, 1]} : vector<16x256xf32> to vector<1x256xf32>
    %c0_4 = arith.constant 0 : index
    %c2 = arith.constant 2 : index
    %12 = vector.load %arg4[%c0_4, %c2] : memref<8x16xf32, #tpu.memory_space<vmem>>, vector<8x1xf32>
    %13 = vector.broadcast %11 : vector<1x256xf32> to vector<8x256xf32>
    %14 = vector.broadcast %12 : vector<8x1xf32> to vector<8x256xf32>
    %15 = arith.mulf %13, %14 : vector<8x256xf32>
    %16 = arith.addf %5, %15 : vector<8x256xf32>
    %17 = vector.extract_strided_slice %0 {offsets = [3, 0], sizes = [1, 256], strides = [1, 1]} : vector<16x256xf32> to vector<1x256xf32>
    %c0_5 = arith.constant 0 : index
    %c3 = arith.constant 3 : index
    %18 = vector.load %arg4[%c0_5, %c3] : memref<8x16xf32, #tpu.memory_space<vmem>>, vector<8x1xf32>
    %19 = vector.broadcast %17 : vector<1x256xf32> to vector<8x256xf32>
    %20 = vector.broadcast %18 : vector<8x1xf32> to vector<8x256xf32>
    %21 = arith.mulf %19, %20 : vector<8x256xf32>
    %22 = arith.addf %10, %21 : vector<8x256xf32>
    %23 = vector.extract_strided_slice %0 {offsets = [4, 0], sizes = [1, 256], strides = [1, 1]} : vector<16x256xf32> to vector<1x256xf32>
    %c0_6 = arith.constant 0 : index
    %c4 = arith.constant 4 : index
    %24 = vector.load %arg4[%c0_6, %c4] : memref<8x16xf32, #tpu.memory_space<vmem>>, vector<8x1xf32>
    %25 = vector.broadcast %23 : vector<1x256xf32> to vector<8x256xf32>
    %26 = vector.broadcast %24 : vector<8x1xf32> to vector<8x256xf32>
    %27 = arith.mulf %25, %26 : vector<8x256xf32>
    %28 = arith.addf %16, %27 : vector<8x256xf32>
    %29 = vector.extract_strided_slice %0 {offsets = [5, 0], sizes = [1, 256], strides = [1, 1]} : vector<16x256xf32> to vector<1x256xf32>
    %c0_7 = arith.constant 0 : index
    %c5 = arith.constant 5 : index
    %30 = vector.load %arg4[%c0_7, %c5] : memref<8x16xf32, #tpu.memory_space<vmem>>, vector<8x1xf32>
    %31 = vector.broadcast %29 : vector<1x256xf32> to vector<8x256xf32>
    %32 = vector.broadcast %30 : vector<8x1xf32> to vector<8x256xf32>
    %33 = arith.mulf %31, %32 : vector<8x256xf32>
    %34 = arith.addf %22, %33 : vector<8x256xf32>
    %35 = vector.extract_strided_slice %0 {offsets = [6, 0], sizes = [1, 256], strides = [1, 1]} : vector<16x256xf32> to vector<1x256xf32>
    %c0_8 = arith.constant 0 : index
    %c6 = arith.constant 6 : index
    %36 = vector.load %arg4[%c0_8, %c6] : memref<8x16xf32, #tpu.memory_space<vmem>>, vector<8x1xf32>
    %37 = vector.broadcast %35 : vector<1x256xf32> to vector<8x256xf32>
    %38 = vector.broadcast %36 : vector<8x1xf32> to vector<8x256xf32>
    %39 = arith.mulf %37, %38 : vector<8x256xf32>
    %40 = arith.addf %28, %39 : vector<8x256xf32>
    %41 = vector.extract_strided_slice %0 {offsets = [7, 0], sizes = [1, 256], strides = [1, 1]} : vector<16x256xf32> to vector<1x256xf32>
    %c0_9 = arith.constant 0 : index
    %c7 = arith.constant 7 : index
    %42 = vector.load %arg4[%c0_9, %c7] : memref<8x16xf32, #tpu.memory_space<vmem>>, vector<8x1xf32>
    %43 = vector.broadcast %41 : vector<1x256xf32> to vector<8x256xf32>
    %44 = vector.broadcast %42 : vector<8x1xf32> to vector<8x256xf32>
    %45 = arith.mulf %43, %44 : vector<8x256xf32>
    %46 = arith.addf %34, %45 : vector<8x256xf32>
    %47 = vector.extract_strided_slice %0 {offsets = [8, 0], sizes = [1, 256], strides = [1, 1]} : vector<16x256xf32> to vector<1x256xf32>
    %c0_10 = arith.constant 0 : index
    %c8 = arith.constant 8 : index
    %48 = vector.load %arg4[%c0_10, %c8] : memref<8x16xf32, #tpu.memory_space<vmem>>, vector<8x1xf32>
    %49 = vector.broadcast %47 : vector<1x256xf32> to vector<8x256xf32>
    %50 = vector.broadcast %48 : vector<8x1xf32> to vector<8x256xf32>
    %51 = arith.mulf %49, %50 : vector<8x256xf32>
    %52 = arith.addf %40, %51 : vector<8x256xf32>
    %53 = vector.extract_strided_slice %0 {offsets = [9, 0], sizes = [1, 256], strides = [1, 1]} : vector<16x256xf32> to vector<1x256xf32>
    %c0_11 = arith.constant 0 : index
    %c9 = arith.constant 9 : index
    %54 = vector.load %arg4[%c0_11, %c9] : memref<8x16xf32, #tpu.memory_space<vmem>>, vector<8x1xf32>
    %55 = vector.broadcast %53 : vector<1x256xf32> to vector<8x256xf32>
    %56 = vector.broadcast %54 : vector<8x1xf32> to vector<8x256xf32>
    %57 = arith.mulf %55, %56 : vector<8x256xf32>
    %58 = arith.addf %46, %57 : vector<8x256xf32>
    %59 = vector.extract_strided_slice %0 {offsets = [10, 0], sizes = [1, 256], strides = [1, 1]} : vector<16x256xf32> to vector<1x256xf32>
    %c0_12 = arith.constant 0 : index
    %c10 = arith.constant 10 : index
    %60 = vector.load %arg4[%c0_12, %c10] : memref<8x16xf32, #tpu.memory_space<vmem>>, vector<8x1xf32>
    %61 = vector.broadcast %59 : vector<1x256xf32> to vector<8x256xf32>
    %62 = vector.broadcast %60 : vector<8x1xf32> to vector<8x256xf32>
    %63 = arith.mulf %61, %62 : vector<8x256xf32>
    %64 = arith.addf %52, %63 : vector<8x256xf32>
    %65 = vector.extract_strided_slice %0 {offsets = [11, 0], sizes = [1, 256], strides = [1, 1]} : vector<16x256xf32> to vector<1x256xf32>
    %c0_13 = arith.constant 0 : index
    %c11 = arith.constant 11 : index
    %66 = vector.load %arg4[%c0_13, %c11] : memref<8x16xf32, #tpu.memory_space<vmem>>, vector<8x1xf32>
    %67 = vector.broadcast %65 : vector<1x256xf32> to vector<8x256xf32>
    %68 = vector.broadcast %66 : vector<8x1xf32> to vector<8x256xf32>
    %69 = arith.mulf %67, %68 : vector<8x256xf32>
    %70 = arith.addf %58, %69 : vector<8x256xf32>
    %71 = vector.extract_strided_slice %0 {offsets = [12, 0], sizes = [1, 256], strides = [1, 1]} : vector<16x256xf32> to vector<1x256xf32>
    %c0_14 = arith.constant 0 : index
    %c12 = arith.constant 12 : index
    %72 = vector.load %arg4[%c0_14, %c12] : memref<8x16xf32, #tpu.memory_space<vmem>>, vector<8x1xf32>
    %73 = vector.broadcast %71 : vector<1x256xf32> to vector<8x256xf32>
    %74 = vector.broadcast %72 : vector<8x1xf32> to vector<8x256xf32>
    %75 = arith.mulf %73, %74 : vector<8x256xf32>
    %76 = arith.addf %64, %75 : vector<8x256xf32>
    %77 = vector.extract_strided_slice %0 {offsets = [13, 0], sizes = [1, 256], strides = [1, 1]} : vector<16x256xf32> to vector<1x256xf32>
    %c0_15 = arith.constant 0 : index
    %c13 = arith.constant 13 : index
    %78 = vector.load %arg4[%c0_15, %c13] : memref<8x16xf32, #tpu.memory_space<vmem>>, vector<8x1xf32>
    %79 = vector.broadcast %77 : vector<1x256xf32> to vector<8x256xf32>
    %80 = vector.broadcast %78 : vector<8x1xf32> to vector<8x256xf32>
    %81 = arith.mulf %79, %80 : vector<8x256xf32>
    %82 = arith.addf %70, %81 : vector<8x256xf32>
    %83 = vector.extract_strided_slice %0 {offsets = [14, 0], sizes = [1, 256], strides = [1, 1]} : vector<16x256xf32> to vector<1x256xf32>
    %c0_16 = arith.constant 0 : index
    %c14 = arith.constant 14 : index
    %84 = vector.load %arg4[%c0_16, %c14] : memref<8x16xf32, #tpu.memory_space<vmem>>, vector<8x1xf32>
    %85 = vector.broadcast %83 : vector<1x256xf32> to vector<8x256xf32>
    %86 = vector.broadcast %84 : vector<8x1xf32> to vector<8x256xf32>
    %87 = arith.mulf %85, %86 : vector<8x256xf32>
    %88 = arith.addf %76, %87 : vector<8x256xf32>
    %89 = vector.extract_strided_slice %0 {offsets = [15, 0], sizes = [1, 256], strides = [1, 1]} : vector<16x256xf32> to vector<1x256xf32>
    %c0_17 = arith.constant 0 : index
    %c15 = arith.constant 15 : index
    %90 = vector.load %arg4[%c0_17, %c15] : memref<8x16xf32, #tpu.memory_space<vmem>>, vector<8x1xf32>
    %91 = vector.broadcast %89 : vector<1x256xf32> to vector<8x256xf32>
    %92 = vector.broadcast %90 : vector<8x1xf32> to vector<8x256xf32>
    %93 = arith.mulf %91, %92 : vector<8x256xf32>
    %94 = arith.addf %82, %93 : vector<8x256xf32>
    %95 = arith.addf %88, %94 : vector<8x256xf32>
    %c0_18 = arith.constant 0 : index
    %c0_19 = arith.constant 0 : index
    %96 = vector.load %arg7[%c0_18, %c0_19] : memref<8x1xf32, #tpu.memory_space<vmem>>, vector<8x1xf32>
    %97 = vector.broadcast %96 : vector<8x1xf32> to vector<8x256xf32>
    %98 = arith.mulf %95, %97 : vector<8x256xf32>
    %c0_20 = arith.constant 0 : index
    %c0_21 = arith.constant 0 : index
    %99 = vector.load %arg8[%c0_20, %c0_21] : memref<8x1xf32, #tpu.memory_space<vmem>>, vector<8x1xf32>
    %100 = vector.broadcast %99 : vector<8x1xf32> to vector<8x256xf32>
    %101 = arith.addf %98, %100 : vector<8x256xf32>
    %102 = arith.negf %101 : vector<8x256xf32>
    %103 = math.exp %102 : vector<8x256xf32>
    %cst = arith.constant 1.000000e+00 : f32
    %104 = vector.broadcast %cst : f32 to vector<8x256xf32>
    %105 = arith.addf %104, %103 : vector<8x256xf32>
    %106 = arith.divf %104, %105 : vector<8x256xf32>
    %107 = arith.mulf %101, %106 : vector<8x256xf32>
    %cst_22 = arith.constant 0.000000e+00 : f32
    %108 = vector.broadcast %cst_22 : f32 to vector<8x64xf32>
    %c0_23 = arith.constant 0 : index
    %c64 = arith.constant 64 : index
    %109 = vector.load %arg14[%c0_23, %c64] : memref<8x512xf32, #tpu.memory_space<vmem>>, vector<8x64xf32>
    tpu.vector_store %arg14[%c0_23, %c64], %108 {strides = array<i32>} : memref<8x512xf32, #tpu.memory_space<vmem>>, vector<8x64xf32>,
    %c0_24 = arith.constant 0 : index
    %c384 = arith.constant 384 : index
    %110 = vector.load %arg14[%c0_24, %c384] : memref<8x512xf32, #tpu.memory_space<vmem>>, vector<8x64xf32>
    tpu.vector_store %arg14[%c0_24, %c384], %108 {strides = array<i32>} : memref<8x512xf32, #tpu.memory_space<vmem>>, vector<8x64xf32>,
    %c0_25 = arith.constant 0 : index
    %c128 = arith.constant 128 : index
    %111 = vector.load %arg14[%c0_25, %c128] : memref<8x512xf32, #tpu.memory_space<vmem>>, vector<8x256xf32>
    tpu.vector_store %arg14[%c0_25, %c128], %107 {strides = array<i32>} : memref<8x512xf32, #tpu.memory_space<vmem>>, vector<8x256xf32>,
    %c0_26 = arith.constant 0 : index
    %c0_27 = arith.constant 0 : index
    %112 = vector.load %arg2[%c0_26, %c0_27] : memref<1x256xi32, #tpu.memory_space<vmem>>, vector<1x256xi32>
    %c0_28 = arith.constant 0 : index
    %c0_29 = arith.constant 0 : index
    %113 = vector.load %arg3[%c0_28, %c0_29] : memref<1x256xi32, #tpu.memory_space<vmem>>, vector<1x256xi32>
    %c15_i32 = arith.constant 15 : i32
    %114 = vector.broadcast %c15_i32 : i32 to vector<1x256xi32>
    %115 = arith.cmpi slt, %112, %114 : vector<1x256xi32>
    %c1_i32 = arith.constant 1 : i32
    %116 = vector.broadcast %c1_i32 : i32 to vector<1x256xi32>
    %117 = arith.cmpi sge, %112, %116 : vector<1x256xi32>
    %c14_i32 = arith.constant 14 : i32
    %118 = vector.broadcast %c14_i32 : i32 to vector<1x256xi32>
    %119 = arith.cmpi slt, %112, %118 : vector<1x256xi32>
    %c2_i32 = arith.constant 2 : i32
    %120 = vector.broadcast %c2_i32 : i32 to vector<1x256xi32>
    %121 = arith.cmpi sge, %112, %120 : vector<1x256xi32>
    %c13_i32 = arith.constant 13 : i32
    %122 = vector.broadcast %c13_i32 : i32 to vector<1x256xi32>
    %123 = arith.cmpi slt, %112, %122 : vector<1x256xi32>
    %c3_i32 = arith.constant 3 : i32
    %124 = vector.broadcast %c3_i32 : i32 to vector<1x256xi32>
    %125 = arith.cmpi sge, %112, %124 : vector<1x256xi32>
    %c15_i32_30 = arith.constant 15 : i32
    %126 = vector.broadcast %c15_i32_30 : i32 to vector<1x256xi32>
    %127 = arith.cmpi slt, %113, %126 : vector<1x256xi32>
    %c1_i32_31 = arith.constant 1 : i32
    %128 = vector.broadcast %c1_i32_31 : i32 to vector<1x256xi32>
    %129 = arith.cmpi sge, %113, %128 : vector<1x256xi32>
    %130 = arith.andi %117, %129 : vector<1x256xi1>
    %131 = arith.andi %115, %129 : vector<1x256xi1>
    %132 = arith.andi %117, %127 : vector<1x256xi1>
    %133 = arith.andi %115, %127 : vector<1x256xi1>
    %cst_32 = arith.constant 0.000000e+00 : f32
    %134 = vector.broadcast %cst_32 : f32 to vector<8x256xf32>
    %cst_33 = arith.constant -3.000000e+38 : f32
    %135 = vector.broadcast %cst_33 : f32 to vector<8x256xf32>
    %cst_34 = arith.constant 0.000000e+00 : f32
    %136 = vector.broadcast %cst_34 : f32 to vector<8x256xf32>
    %cst_35 = arith.constant 0.000000e+00 : f32
    %137 = vector.broadcast %cst_35 : f32 to vector<8x256xf32>
    %c0_36 = arith.constant 0 : index
    %c111 = arith.constant 111 : index
    %138 = vector.load %arg14[%c0_36, %c111] : memref<8x512xf32, #tpu.memory_space<vmem>>, vector<8x256xf32>
    %cst_37 = arith.constant 0.000000e+00 : f32
    %139 = vector.shape_cast %117 : vector<1x256xi1> to vector<1x256xi1>
    %140 = vector.broadcast %139 : vector<1x256xi1> to vector<8x256xi1>
    %141 = vector.broadcast %cst_37 : f32 to vector<8x256xf32>
    %142 = arith.select %140, %138, %141 : vector<8x256xi1>, vector<8x256xf32>
    %c0_38 = arith.constant 0 : index
    %c0_39 = arith.constant 0 : index
    %143 = vector.load %arg5[%c0_38, %c0_39] : memref<8x27xf32, #tpu.memory_space<vmem>>, vector<8x1xf32>
    %144 = vector.broadcast %143 : vector<8x1xf32> to vector<8x256xf32>
    %145 = arith.mulf %142, %144 : vector<8x256xf32>
    %146 = arith.addf %137, %145 : vector<8x256xf32>
    %147 = arith.addf %136, %142 : vector<8x256xf32>
    %cst_40 = arith.constant -3.000000e+38 : f32
    %148 = vector.shape_cast %130 : vector<1x256xi1> to vector<1x256xi1>
    %149 = vector.broadcast %148 : vector<1x256xi1> to vector<8x256xi1>
    %150 = vector.broadcast %cst_40 : f32 to vector<8x256xf32>
    %151 = arith.select %149, %138, %150 : vector<8x256xi1>, vector<8x256xf32>
    %152 = arith.maximumf %135, %151 : vector<8x256xf32>
    %c0_41 = arith.constant 0 : index
    %c112 = arith.constant 112 : index
    %153 = vector.load %arg14[%c0_41, %c112] : memref<8x512xf32, #tpu.memory_space<vmem>>, vector<8x256xf32>
    %c0_42 = arith.constant 0 : index
    %c1_43 = arith.constant 1 : index
    %154 = vector.load %arg5[%c0_42, %c1_43] : memref<8x27xf32, #tpu.memory_space<vmem>>, vector<8x1xf32>
    %155 = vector.broadcast %154 : vector<8x1xf32> to vector<8x256xf32>
    %156 = arith.mulf %153, %155 : vector<8x256xf32>
    %157 = arith.addf %146, %156 : vector<8x256xf32>
    %158 = arith.addf %147, %153 : vector<8x256xf32>
    %cst_44 = arith.constant -3.000000e+38 : f32
    %159 = vector.shape_cast %129 : vector<1x256xi1> to vector<1x256xi1>
    %160 = vector.broadcast %159 : vector<1x256xi1> to vector<8x256xi1>
    %161 = vector.broadcast %cst_44 : f32 to vector<8x256xf32>
    %162 = arith.select %160, %153, %161 : vector<8x256xi1>, vector<8x256xf32>
    %163 = arith.maximumf %152, %162 : vector<8x256xf32>
    %c0_45 = arith.constant 0 : index
    %c113 = arith.constant 113 : index
    %164 = vector.load %arg14[%c0_45, %c113] : memref<8x512xf32, #tpu.memory_space<vmem>>, vector<8x256xf32>
    %cst_46 = arith.constant 0.000000e+00 : f32
    %165 = vector.shape_cast %115 : vector<1x256xi1> to vector<1x256xi1>
    %166 = vector.broadcast %165 : vector<1x256xi1> to vector<8x256xi1>
    %167 = vector.broadcast %cst_46 : f32 to vector<8x256xf32>
    %168 = arith.select %166, %164, %167 : vector<8x256xi1>, vector<8x256xf32>
    %c0_47 = arith.constant 0 : index
    %c2_48 = arith.constant 2 : index
    %169 = vector.load %arg5[%c0_47, %c2_48] : memref<8x27xf32, #tpu.memory_space<vmem>>, vector<8x1xf32>
    %170 = vector.broadcast %169 : vector<8x1xf32> to vector<8x256xf32>
    %171 = arith.mulf %168, %170 : vector<8x256xf32>
    %172 = arith.addf %157, %171 : vector<8x256xf32>
    %173 = arith.addf %158, %168 : vector<8x256xf32>
    %cst_49 = arith.constant -3.000000e+38 : f32
    %174 = vector.shape_cast %131 : vector<1x256xi1> to vector<1x256xi1>
    %175 = vector.broadcast %174 : vector<1x256xi1> to vector<8x256xi1>
    %176 = vector.broadcast %cst_49 : f32 to vector<8x256xf32>
    %177 = arith.select %175, %164, %176 : vector<8x256xi1>, vector<8x256xf32>
    %178 = arith.maximumf %163, %177 : vector<8x256xf32>
    %c0_50 = arith.constant 0 : index
    %c127 = arith.constant 127 : index
    %179 = vector.load %arg14[%c0_50, %c127] : memref<8x512xf32, #tpu.memory_space<vmem>>, vector<8x256xf32>
    %cst_51 = arith.constant 0.000000e+00 : f32
    %180 = vector.shape_cast %117 : vector<1x256xi1> to vector<1x256xi1>
    %181 = vector.broadcast %180 : vector<1x256xi1> to vector<8x256xi1>
    %182 = vector.broadcast %cst_51 : f32 to vector<8x256xf32>
    %183 = arith.select %181, %179, %182 : vector<8x256xi1>, vector<8x256xf32>
    %c0_52 = arith.constant 0 : index
    %c3_53 = arith.constant 3 : index
    %184 = vector.load %arg5[%c0_52, %c3_53] : memref<8x27xf32, #tpu.memory_space<vmem>>, vector<8x1xf32>
    %185 = vector.broadcast %184 : vector<8x1xf32> to vector<8x256xf32>
    %186 = arith.mulf %183, %185 : vector<8x256xf32>
    %187 = arith.addf %172, %186 : vector<8x256xf32>
    %188 = arith.addf %173, %183 : vector<8x256xf32>
    %cst_54 = arith.constant -3.000000e+38 : f32
    %189 = vector.shape_cast %117 : vector<1x256xi1> to vector<1x256xi1>
    %190 = vector.broadcast %189 : vector<1x256xi1> to vector<8x256xi1>
    %191 = vector.broadcast %cst_54 : f32 to vector<8x256xf32>
    %192 = arith.select %190, %179, %191 : vector<8x256xi1>, vector<8x256xf32>
    %193 = arith.maximumf %178, %192 : vector<8x256xf32>
    %c0_55 = arith.constant 0 : index
    %c128_56 = arith.constant 128 : index
    %194 = vector.load %arg14[%c0_55, %c128_56] : memref<8x512xf32, #tpu.memory_space<vmem>>, vector<8x256xf32>
    %c0_57 = arith.constant 0 : index
    %c4_58 = arith.constant 4 : index
    %195 = vector.load %arg5[%c0_57, %c4_58] : memref<8x27xf32, #tpu.memory_space<vmem>>, vector<8x1xf32>
    %196 = vector.broadcast %195 : vector<8x1xf32> to vector<8x256xf32>
    %197 = arith.mulf %194, %196 : vector<8x256xf32>
    %198 = arith.addf %187, %197 : vector<8x256xf32>
    %199 = arith.addf %188, %194 : vector<8x256xf32>
    %200 = arith.maximumf %193, %194 : vector<8x256xf32>
    %c0_59 = arith.constant 0 : index
    %c129 = arith.constant 129 : index
    %201 = vector.load %arg14[%c0_59, %c129] : memref<8x512xf32, #tpu.memory_space<vmem>>, vector<8x256xf32>
    %cst_60 = arith.constant 0.000000e+00 : f32
    %202 = vector.shape_cast %115 : vector<1x256xi1> to vector<1x256xi1>
    %203 = vector.broadcast %202 : vector<1x256xi1> to vector<8x256xi1>
    %204 = vector.broadcast %cst_60 : f32 to vector<8x256xf32>
    %205 = arith.select %203, %201, %204 : vector<8x256xi1>, vector<8x256xf32>
    %c0_61 = arith.constant 0 : index
    %c5_62 = arith.constant 5 : index
    %206 = vector.load %arg5[%c0_61, %c5_62] : memref<8x27xf32, #tpu.memory_space<vmem>>, vector<8x1xf32>
    %207 = vector.broadcast %206 : vector<8x1xf32> to vector<8x256xf32>
    %208 = arith.mulf %205, %207 : vector<8x256xf32>
    %209 = arith.addf %198, %208 : vector<8x256xf32>
    %210 = arith.addf %199, %205 : vector<8x256xf32>
    %cst_63 = arith.constant -3.000000e+38 : f32
    %211 = vector.shape_cast %115 : vector<1x256xi1> to vector<1x256xi1>
    %212 = vector.broadcast %211 : vector<1x256xi1> to vector<8x256xi1>
    %213 = vector.broadcast %cst_63 : f32 to vector<8x256xf32>
    %214 = arith.select %212, %201, %213 : vector<8x256xi1>, vector<8x256xf32>
    %215 = arith.maximumf %200, %214 : vector<8x256xf32>
    %c0_64 = arith.constant 0 : index
    %c143 = arith.constant 143 : index
    %216 = vector.load %arg14[%c0_64, %c143] : memref<8x512xf32, #tpu.memory_space<vmem>>, vector<8x256xf32>
    %cst_65 = arith.constant 0.000000e+00 : f32
    %217 = vector.shape_cast %117 : vector<1x256xi1> to vector<1x256xi1>
    %218 = vector.broadcast %217 : vector<1x256xi1> to vector<8x256xi1>
    %219 = vector.broadcast %cst_65 : f32 to vector<8x256xf32>
    %220 = arith.select %218, %216, %219 : vector<8x256xi1>, vector<8x256xf32>
    %c0_66 = arith.constant 0 : index
    %c6_67 = arith.constant 6 : index
    %221 = vector.load %arg5[%c0_66, %c6_67] : memref<8x27xf32, #tpu.memory_space<vmem>>, vector<8x1xf32>
    %222 = vector.broadcast %221 : vector<8x1xf32> to vector<8x256xf32>
    %223 = arith.mulf %220, %222 : vector<8x256xf32>
    %224 = arith.addf %209, %223 : vector<8x256xf32>
    %225 = arith.addf %210, %220 : vector<8x256xf32>
    %cst_68 = arith.constant -3.000000e+38 : f32
    %226 = vector.shape_cast %132 : vector<1x256xi1> to vector<1x256xi1>
    %227 = vector.broadcast %226 : vector<1x256xi1> to vector<8x256xi1>
    %228 = vector.broadcast %cst_68 : f32 to vector<8x256xf32>
    %229 = arith.select %227, %216, %228 : vector<8x256xi1>, vector<8x256xf32>
    %230 = arith.maximumf %215, %229 : vector<8x256xf32>
    %c0_69 = arith.constant 0 : index
    %c144 = arith.constant 144 : index
    %231 = vector.load %arg14[%c0_69, %c144] : memref<8x512xf32, #tpu.memory_space<vmem>>, vector<8x256xf32>
    %c0_70 = arith.constant 0 : index
    %c7_71 = arith.constant 7 : index
    %232 = vector.load %arg5[%c0_70, %c7_71] : memref<8x27xf32, #tpu.memory_space<vmem>>, vector<8x1xf32>
    %233 = vector.broadcast %232 : vector<8x1xf32> to vector<8x256xf32>
    %234 = arith.mulf %231, %233 : vector<8x256xf32>
    %235 = arith.addf %224, %234 : vector<8x256xf32>
    %236 = arith.addf %225, %231 : vector<8x256xf32>
    %cst_72 = arith.constant -3.000000e+38 : f32
    %237 = vector.shape_cast %127 : vector<1x256xi1> to vector<1x256xi1>
    %238 = vector.broadcast %237 : vector<1x256xi1> to vector<8x256xi1>
    %239 = vector.broadcast %cst_72 : f32 to vector<8x256xf32>
    %240 = arith.select %238, %231, %239 : vector<8x256xi1>, vector<8x256xf32>
    %241 = arith.maximumf %230, %240 : vector<8x256xf32>
    %c0_73 = arith.constant 0 : index
    %c145 = arith.constant 145 : index
    %242 = vector.load %arg14[%c0_73, %c145] : memref<8x512xf32, #tpu.memory_space<vmem>>, vector<8x256xf32>
    %cst_74 = arith.constant 0.000000e+00 : f32
    %243 = vector.shape_cast %115 : vector<1x256xi1> to vector<1x256xi1>
    %244 = vector.broadcast %243 : vector<1x256xi1> to vector<8x256xi1>
    %245 = vector.broadcast %cst_74 : f32 to vector<8x256xf32>
    %246 = arith.select %244, %242, %245 : vector<8x256xi1>, vector<8x256xf32>
    %c0_75 = arith.constant 0 : index
    %c8_76 = arith.constant 8 : index
    %247 = vector.load %arg5[%c0_75, %c8_76] : memref<8x27xf32, #tpu.memory_space<vmem>>, vector<8x1xf32>
    %248 = vector.broadcast %247 : vector<8x1xf32> to vector<8x256xf32>
    %249 = arith.mulf %246, %248 : vector<8x256xf32>
    %250 = arith.addf %235, %249 : vector<8x256xf32>
    %251 = arith.addf %236, %246 : vector<8x256xf32>
    %cst_77 = arith.constant -3.000000e+38 : f32
    %252 = vector.shape_cast %133 : vector<1x256xi1> to vector<1x256xi1>
    %253 = vector.broadcast %252 : vector<1x256xi1> to vector<8x256xi1>
    %254 = vector.broadcast %cst_77 : f32 to vector<8x256xf32>
    %255 = arith.select %253, %242, %254 : vector<8x256xi1>, vector<8x256xf32>
    %256 = arith.maximumf %241, %255 : vector<8x256xf32>
    %c0_78 = arith.constant 0 : index
    %c0_79 = arith.constant 0 : index
    %257 = vector.load %arg9[%c0_78, %c0_79] : memref<8x3xf32, #tpu.memory_space<vmem>>, vector<8x1xf32>
    %258 = vector.broadcast %257 : vector<8x1xf32> to vector<8x256xf32>
    %259 = arith.mulf %250, %258 : vector<8x256xf32>
    %c0_80 = arith.constant 0 : index
    %c0_81 = arith.constant 0 : index
    %260 = vector.load %arg10[%c0_80, %c0_81] : memref<8x3xf32, #tpu.memory_space<vmem>>, vector<8x1xf32>
    %261 = vector.broadcast %260 : vector<8x1xf32> to vector<8x256xf32>
    %262 = arith.addf %259, %261 : vector<8x256xf32>
    %263 = arith.negf %262 : vector<8x256xf32>
    %264 = math.exp %263 : vector<8x256xf32>
    %cst_82 = arith.constant 1.000000e+00 : f32
    %265 = vector.broadcast %cst_82 : f32 to vector<8x256xf32>
    %266 = arith.addf %265, %264 : vector<8x256xf32>
    %267 = arith.divf %265, %266 : vector<8x256xf32>
    %268 = arith.mulf %262, %267 : vector<8x256xf32>
    %269 = arith.addf %134, %268 : vector<8x256xf32>
    %cst_83 = arith.constant 0.000000e+00 : f32
    %270 = vector.broadcast %cst_83 : f32 to vector<8x256xf32>
    %c0_84 = arith.constant 0 : index
    %c94 = arith.constant 94 : index
    %271 = vector.load %arg14[%c0_84, %c94] : memref<8x512xf32, #tpu.memory_space<vmem>>, vector<8x256xf32>
    %cst_85 = arith.constant 0.000000e+00 : f32
    %272 = vector.shape_cast %121 : vector<1x256xi1> to vector<1x256xi1>
    %273 = vector.broadcast %272 : vector<1x256xi1> to vector<8x256xi1>
    %274 = vector.broadcast %cst_85 : f32 to vector<8x256xf32>
    %275 = arith.select %273, %271, %274 : vector<8x256xi1>, vector<8x256xf32>
    %c0_86 = arith.constant 0 : index
    %c9_87 = arith.constant 9 : index
    %276 = vector.load %arg5[%c0_86, %c9_87] : memref<8x27xf32, #tpu.memory_space<vmem>>, vector<8x1xf32>
    %277 = vector.broadcast %276 : vector<8x1xf32> to vector<8x256xf32>
    %278 = arith.mulf %275, %277 : vector<8x256xf32>
    %279 = arith.addf %270, %278 : vector<8x256xf32>
    %c0_88 = arith.constant 0 : index
    %c96 = arith.constant 96 : index
    %280 = vector.load %arg14[%c0_88, %c96] : memref<8x512xf32, #tpu.memory_space<vmem>>, vector<8x256xf32>
    %c0_89 = arith.constant 0 : index
    %c10_90 = arith.constant 10 : index
    %281 = vector.load %arg5[%c0_89, %c10_90] : memref<8x27xf32, #tpu.memory_space<vmem>>, vector<8x1xf32>
    %282 = vector.broadcast %281 : vector<8x1xf32> to vector<8x256xf32>
    %283 = arith.mulf %280, %282 : vector<8x256xf32>
    %284 = arith.addf %279, %283 : vector<8x256xf32>
    %c0_91 = arith.constant 0 : index
    %c98 = arith.constant 98 : index
    %285 = vector.load %arg14[%c0_91, %c98] : memref<8x512xf32, #tpu.memory_space<vmem>>, vector<8x256xf32>
    %cst_92 = arith.constant 0.000000e+00 : f32
    %286 = vector.shape_cast %119 : vector<1x256xi1> to vector<1x256xi1>
    %287 = vector.broadcast %286 : vector<1x256xi1> to vector<8x256xi1>
    %288 = vector.broadcast %cst_92 : f32 to vector<8x256xf32>
    %289 = arith.select %287, %285, %288 : vector<8x256xi1>, vector<8x256xf32>
    %c0_93 = arith.constant 0 : index
    %c11_94 = arith.constant 11 : index
    %290 = vector.load %arg5[%c0_93, %c11_94] : memref<8x27xf32, #tpu.memory_space<vmem>>, vector<8x1xf32>
    %291 = vector.broadcast %290 : vector<8x1xf32> to vector<8x256xf32>
    %292 = arith.mulf %289, %291 : vector<8x256xf32>
    %293 = arith.addf %284, %292 : vector<8x256xf32>
    %c0_95 = arith.constant 0 : index
    %c126 = arith.constant 126 : index
    %294 = vector.load %arg14[%c0_95, %c126] : memref<8x512xf32, #tpu.memory_space<vmem>>, vector<8x256xf32>
    %cst_96 = arith.constant 0.000000e+00 : f32
    %295 = vector.shape_cast %121 : vector<1x256xi1> to vector<1x256xi1>
    %296 = vector.broadcast %295 : vector<1x256xi1> to vector<8x256xi1>
    %297 = vector.broadcast %cst_96 : f32 to vector<8x256xf32>
    %298 = arith.select %296, %294, %297 : vector<8x256xi1>, vector<8x256xf32>
    %c0_97 = arith.constant 0 : index
    %c12_98 = arith.constant 12 : index
    %299 = vector.load %arg5[%c0_97, %c12_98] : memref<8x27xf32, #tpu.memory_space<vmem>>, vector<8x1xf32>
    %300 = vector.broadcast %299 : vector<8x1xf32> to vector<8x256xf32>
    %301 = arith.mulf %298, %300 : vector<8x256xf32>
    %302 = arith.addf %293, %301 : vector<8x256xf32>
    %c0_99 = arith.constant 0 : index
    %c128_100 = arith.constant 128 : index
    %303 = vector.load %arg14[%c0_99, %c128_100] : memref<8x512xf32, #tpu.memory_space<vmem>>, vector<8x256xf32>
    %c0_101 = arith.constant 0 : index
    %c13_102 = arith.constant 13 : index
    %304 = vector.load %arg5[%c0_101, %c13_102] : memref<8x27xf32, #tpu.memory_space<vmem>>, vector<8x1xf32>
    %305 = vector.broadcast %304 : vector<8x1xf32> to vector<8x256xf32>
    %306 = arith.mulf %303, %305 : vector<8x256xf32>
    %307 = arith.addf %302, %306 : vector<8x256xf32>
    %c0_103 = arith.constant 0 : index
    %c130 = arith.constant 130 : index
    %308 = vector.load %arg14[%c0_103, %c130] : memref<8x512xf32, #tpu.memory_space<vmem>>, vector<8x256xf32>
    %cst_104 = arith.constant 0.000000e+00 : f32
    %309 = vector.shape_cast %119 : vector<1x256xi1> to vector<1x256xi1>
    %310 = vector.broadcast %309 : vector<1x256xi1> to vector<8x256xi1>
    %311 = vector.broadcast %cst_104 : f32 to vector<8x256xf32>
    %312 = arith.select %310, %308, %311 : vector<8x256xi1>, vector<8x256xf32>
    %c0_105 = arith.constant 0 : index
    %c14_106 = arith.constant 14 : index
    %313 = vector.load %arg5[%c0_105, %c14_106] : memref<8x27xf32, #tpu.memory_space<vmem>>, vector<8x1xf32>
    %314 = vector.broadcast %313 : vector<8x1xf32> to vector<8x256xf32>
    %315 = arith.mulf %312, %314 : vector<8x256xf32>
    %316 = arith.addf %307, %315 : vector<8x256xf32>
    %c0_107 = arith.constant 0 : index
    %c158 = arith.constant 158 : index
    %317 = vector.load %arg14[%c0_107, %c158] : memref<8x512xf32, #tpu.memory_space<vmem>>, vector<8x256xf32>
    %cst_108 = arith.constant 0.000000e+00 : f32
    %318 = vector.shape_cast %121 : vector<1x256xi1> to vector<1x256xi1>
    %319 = vector.broadcast %318 : vector<1x256xi1> to vector<8x256xi1>
    %320 = vector.broadcast %cst_108 : f32 to vector<8x256xf32>
    %321 = arith.select %319, %317, %320 : vector<8x256xi1>, vector<8x256xf32>
    %c0_109 = arith.constant 0 : index
    %c15_110 = arith.constant 15 : index
    %322 = vector.load %arg5[%c0_109, %c15_110] : memref<8x27xf32, #tpu.memory_space<vmem>>, vector<8x1xf32>
    %323 = vector.broadcast %322 : vector<8x1xf32> to vector<8x256xf32>
    %324 = arith.mulf %321, %323 : vector<8x256xf32>
    %325 = arith.addf %316, %324 : vector<8x256xf32>
    %c0_111 = arith.constant 0 : index
    %c160 = arith.constant 160 : index
    %326 = vector.load %arg14[%c0_111, %c160] : memref<8x512xf32, #tpu.memory_space<vmem>>, vector<8x256xf32>
    %c0_112 = arith.constant 0 : index
    %c16 = arith.constant 16 : index
    %327 = vector.load %arg5[%c0_112, %c16] : memref<8x27xf32, #tpu.memory_space<vmem>>, vector<8x1xf32>
    %328 = vector.broadcast %327 : vector<8x1xf32> to vector<8x256xf32>
    %329 = arith.mulf %326, %328 : vector<8x256xf32>
    %330 = arith.addf %325, %329 : vector<8x256xf32>
    %c0_113 = arith.constant 0 : index
    %c162 = arith.constant 162 : index
    %331 = vector.load %arg14[%c0_113, %c162] : memref<8x512xf32, #tpu.memory_space<vmem>>, vector<8x256xf32>
    %cst_114 = arith.constant 0.000000e+00 : f32
    %332 = vector.shape_cast %119 : vector<1x256xi1> to vector<1x256xi1>
    %333 = vector.broadcast %332 : vector<1x256xi1> to vector<8x256xi1>
    %334 = vector.broadcast %cst_114 : f32 to vector<8x256xf32>
    %335 = arith.select %333, %331, %334 : vector<8x256xi1>, vector<8x256xf32>
    %c0_115 = arith.constant 0 : index
    %c17 = arith.constant 17 : index
    %336 = vector.load %arg5[%c0_115, %c17] : memref<8x27xf32, #tpu.memory_space<vmem>>, vector<8x1xf32>
    %337 = vector.broadcast %336 : vector<8x1xf32> to vector<8x256xf32>
    %338 = arith.mulf %335, %337 : vector<8x256xf32>
    %339 = arith.addf %330, %338 : vector<8x256xf32>
    %c0_116 = arith.constant 0 : index
    %c1_117 = arith.constant 1 : index
    %340 = vector.load %arg9[%c0_116, %c1_117] : memref<8x3xf32, #tpu.memory_space<vmem>>, vector<8x1xf32>
    %341 = vector.broadcast %340 : vector<8x1xf32> to vector<8x256xf32>
    %342 = arith.mulf %339, %341 : vector<8x256xf32>
    %c0_118 = arith.constant 0 : index
    %c1_119 = arith.constant 1 : index
    %343 = vector.load %arg10[%c0_118, %c1_119] : memref<8x3xf32, #tpu.memory_space<vmem>>, vector<8x1xf32>
    %344 = vector.broadcast %343 : vector<8x1xf32> to vector<8x256xf32>
    %345 = arith.addf %342, %344 : vector<8x256xf32>
    %346 = arith.negf %345 : vector<8x256xf32>
    %347 = math.exp %346 : vector<8x256xf32>
    %cst_120 = arith.constant 1.000000e+00 : f32
    %348 = vector.broadcast %cst_120 : f32 to vector<8x256xf32>
    %349 = arith.addf %348, %347 : vector<8x256xf32>
    %350 = arith.divf %348, %349 : vector<8x256xf32>
    %351 = arith.mulf %345, %350 : vector<8x256xf32>
    %352 = arith.addf %269, %351 : vector<8x256xf32>
    %cst_121 = arith.constant 0.000000e+00 : f32
    %353 = vector.broadcast %cst_121 : f32 to vector<8x256xf32>
    %c0_122 = arith.constant 0 : index
    %c77 = arith.constant 77 : index
    %354 = vector.load %arg14[%c0_122, %c77] : memref<8x512xf32, #tpu.memory_space<vmem>>, vector<8x256xf32>
    %cst_123 = arith.constant 0.000000e+00 : f32
    %355 = vector.shape_cast %125 : vector<1x256xi1> to vector<1x256xi1>
    %356 = vector.broadcast %355 : vector<1x256xi1> to vector<8x256xi1>
    %357 = vector.broadcast %cst_123 : f32 to vector<8x256xf32>
    %358 = arith.select %356, %354, %357 : vector<8x256xi1>, vector<8x256xf32>
    %c0_124 = arith.constant 0 : index
    %c18 = arith.constant 18 : index
    %359 = vector.load %arg5[%c0_124, %c18] : memref<8x27xf32, #tpu.memory_space<vmem>>, vector<8x1xf32>
    %360 = vector.broadcast %359 : vector<8x1xf32> to vector<8x256xf32>
    %361 = arith.mulf %358, %360 : vector<8x256xf32>
    %362 = arith.addf %353, %361 : vector<8x256xf32>
    %c0_125 = arith.constant 0 : index
    %c80 = arith.constant 80 : index
    %363 = vector.load %arg14[%c0_125, %c80] : memref<8x512xf32, #tpu.memory_space<vmem>>, vector<8x256xf32>
    %c0_126 = arith.constant 0 : index
    %c19 = arith.constant 19 : index
    %364 = vector.load %arg5[%c0_126, %c19] : memref<8x27xf32, #tpu.memory_space<vmem>>, vector<8x1xf32>
    %365 = vector.broadcast %364 : vector<8x1xf32> to vector<8x256xf32>
    %366 = arith.mulf %363, %365 : vector<8x256xf32>
    %367 = arith.addf %362, %366 : vector<8x256xf32>
    %c0_127 = arith.constant 0 : index
    %c83 = arith.constant 83 : index
    %368 = vector.load %arg14[%c0_127, %c83] : memref<8x512xf32, #tpu.memory_space<vmem>>, vector<8x256xf32>
    %cst_128 = arith.constant 0.000000e+00 : f32
    %369 = vector.shape_cast %123 : vector<1x256xi1> to vector<1x256xi1>
    %370 = vector.broadcast %369 : vector<1x256xi1> to vector<8x256xi1>
    %371 = vector.broadcast %cst_128 : f32 to vector<8x256xf32>
    %372 = arith.select %370, %368, %371 : vector<8x256xi1>, vector<8x256xf32>
    %c0_129 = arith.constant 0 : index
    %c20 = arith.constant 20 : index
    %373 = vector.load %arg5[%c0_129, %c20] : memref<8x27xf32, #tpu.memory_space<vmem>>, vector<8x1xf32>
    %374 = vector.broadcast %373 : vector<8x1xf32> to vector<8x256xf32>
    %375 = arith.mulf %372, %374 : vector<8x256xf32>
    %376 = arith.addf %367, %375 : vector<8x256xf32>
    %c0_130 = arith.constant 0 : index
    %c125 = arith.constant 125 : index
    %377 = vector.load %arg14[%c0_130, %c125] : memref<8x512xf32, #tpu.memory_space<vmem>>, vector<8x256xf32>
    %cst_131 = arith.constant 0.000000e+00 : f32
    %378 = vector.shape_cast %125 : vector<1x256xi1> to vector<1x256xi1>
    %379 = vector.broadcast %378 : vector<1x256xi1> to vector<8x256xi1>
    %380 = vector.broadcast %cst_131 : f32 to vector<8x256xf32>
    %381 = arith.select %379, %377, %380 : vector<8x256xi1>, vector<8x256xf32>
    %c0_132 = arith.constant 0 : index
    %c21 = arith.constant 21 : index
    %382 = vector.load %arg5[%c0_132, %c21] : memref<8x27xf32, #tpu.memory_space<vmem>>, vector<8x1xf32>
    %383 = vector.broadcast %382 : vector<8x1xf32> to vector<8x256xf32>
    %384 = arith.mulf %381, %383 : vector<8x256xf32>
    %385 = arith.addf %376, %384 : vector<8x256xf32>
    %c0_133 = arith.constant 0 : index
    %c128_134 = arith.constant 128 : index
    %386 = vector.load %arg14[%c0_133, %c128_134] : memref<8x512xf32, #tpu.memory_space<vmem>>, vector<8x256xf32>
    %c0_135 = arith.constant 0 : index
    %c22 = arith.constant 22 : index
    %387 = vector.load %arg5[%c0_135, %c22] : memref<8x27xf32, #tpu.memory_space<vmem>>, vector<8x1xf32>
    %388 = vector.broadcast %387 : vector<8x1xf32> to vector<8x256xf32>
    %389 = arith.mulf %386, %388 : vector<8x256xf32>
    %390 = arith.addf %385, %389 : vector<8x256xf32>
    %c0_136 = arith.constant 0 : index
    %c131 = arith.constant 131 : index
    %391 = vector.load %arg14[%c0_136, %c131] : memref<8x512xf32, #tpu.memory_space<vmem>>, vector<8x256xf32>
    %cst_137 = arith.constant 0.000000e+00 : f32
    %392 = vector.shape_cast %123 : vector<1x256xi1> to vector<1x256xi1>
    %393 = vector.broadcast %392 : vector<1x256xi1> to vector<8x256xi1>
    %394 = vector.broadcast %cst_137 : f32 to vector<8x256xf32>
    %395 = arith.select %393, %391, %394 : vector<8x256xi1>, vector<8x256xf32>
    %c0_138 = arith.constant 0 : index
    %c23 = arith.constant 23 : index
    %396 = vector.load %arg5[%c0_138, %c23] : memref<8x27xf32, #tpu.memory_space<vmem>>, vector<8x1xf32>
    %397 = vector.broadcast %396 : vector<8x1xf32> to vector<8x256xf32>
    %398 = arith.mulf %395, %397 : vector<8x256xf32>
    %399 = arith.addf %390, %398 : vector<8x256xf32>
    %c0_139 = arith.constant 0 : index
    %c173 = arith.constant 173 : index
    %400 = vector.load %arg14[%c0_139, %c173] : memref<8x512xf32, #tpu.memory_space<vmem>>, vector<8x256xf32>
    %cst_140 = arith.constant 0.000000e+00 : f32
    %401 = vector.shape_cast %125 : vector<1x256xi1> to vector<1x256xi1>
    %402 = vector.broadcast %401 : vector<1x256xi1> to vector<8x256xi1>
    %403 = vector.broadcast %cst_140 : f32 to vector<8x256xf32>
    %404 = arith.select %402, %400, %403 : vector<8x256xi1>, vector<8x256xf32>
    %c0_141 = arith.constant 0 : index
    %c24 = arith.constant 24 : index
    %405 = vector.load %arg5[%c0_141, %c24] : memref<8x27xf32, #tpu.memory_space<vmem>>, vector<8x1xf32>
    %406 = vector.broadcast %405 : vector<8x1xf32> to vector<8x256xf32>
    %407 = arith.mulf %404, %406 : vector<8x256xf32>
    %408 = arith.addf %399, %407 : vector<8x256xf32>
    %c0_142 = arith.constant 0 : index
    %c176 = arith.constant 176 : index
    %409 = vector.load %arg14[%c0_142, %c176] : memref<8x512xf32, #tpu.memory_space<vmem>>, vector<8x256xf32>
    %c0_143 = arith.constant 0 : index
    %c25 = arith.constant 25 : index
    %410 = vector.load %arg5[%c0_143, %c25] : memref<8x27xf32, #tpu.memory_space<vmem>>, vector<8x1xf32>
    %411 = vector.broadcast %410 : vector<8x1xf32> to vector<8x256xf32>
    %412 = arith.mulf %409, %411 : vector<8x256xf32>
    %413 = arith.addf %408, %412 : vector<8x256xf32>
    %c0_144 = arith.constant 0 : index
    %c179 = arith.constant 179 : index
    %414 = vector.load %arg14[%c0_144, %c179] : memref<8x512xf32, #tpu.memory_space<vmem>>, vector<8x256xf32>
    %cst_145 = arith.constant 0.000000e+00 : f32
    %415 = vector.shape_cast %123 : vector<1x256xi1> to vector<1x256xi1>
    %416 = vector.broadcast %415 : vector<1x256xi1> to vector<8x256xi1>
    %417 = vector.broadcast %cst_145 : f32 to vector<8x256xf32>
    %418 = arith.select %416, %414, %417 : vector<8x256xi1>, vector<8x256xf32>
    %c0_146 = arith.constant 0 : index
    %c26 = arith.constant 26 : index
    %419 = vector.load %arg5[%c0_146, %c26] : memref<8x27xf32, #tpu.memory_space<vmem>>, vector<8x1xf32>
    %420 = vector.broadcast %419 : vector<8x1xf32> to vector<8x256xf32>
    %421 = arith.mulf %418, %420 : vector<8x256xf32>
    %422 = arith.addf %413, %421 : vector<8x256xf32>
    %c0_147 = arith.constant 0 : index
    %c2_148 = arith.constant 2 : index
    %423 = vector.load %arg9[%c0_147, %c2_148] : memref<8x3xf32, #tpu.memory_space<vmem>>, vector<8x1xf32>
    %424 = vector.broadcast %423 : vector<8x1xf32> to vector<8x256xf32>
    %425 = arith.mulf %422, %424 : vector<8x256xf32>
    %c0_149 = arith.constant 0 : index
    %c2_150 = arith.constant 2 : index
    %426 = vector.load %arg10[%c0_149, %c2_150] : memref<8x3xf32, #tpu.memory_space<vmem>>, vector<8x1xf32>
    %427 = vector.broadcast %426 : vector<8x1xf32> to vector<8x256xf32>
    %428 = arith.addf %425, %427 : vector<8x256xf32>
    %429 = arith.negf %428 : vector<8x256xf32>
    %430 = math.exp %429 : vector<8x256xf32>
    %cst_151 = arith.constant 1.000000e+00 : f32
    %431 = vector.broadcast %cst_151 : f32 to vector<8x256xf32>
    %432 = arith.addf %431, %430 : vector<8x256xf32>
    %433 = arith.divf %431, %432 : vector<8x256xf32>
    %434 = arith.mulf %428, %433 : vector<8x256xf32>
    %435 = arith.addf %352, %434 : vector<8x256xf32>
    %436 = arith.addf %435, %256 : vector<8x256xf32>
    %cst_152 = arith.constant 0.111111112 : f32
    %437 = vector.broadcast %cst_152 : f32 to vector<8x256xf32>
    %438 = arith.mulf %251, %437 : vector<8x256xf32>
    %439 = arith.addf %436, %438 : vector<8x256xf32>
    %440 = vector.extract_strided_slice %439 {offsets = [0, 0], sizes = [1, 256], strides = [1, 1]} : vector<8x256xf32> to vector<1x256xf32>
    %c0_153 = arith.constant 0 : index
    %c0_154 = arith.constant 0 : index
    %441 = vector.load %arg6[%c0_153, %c0_154] : memref<16x8xf32, #tpu.memory_space<vmem>>, vector<16x1xf32>
    %442 = vector.broadcast %440 : vector<1x256xf32> to vector<16x256xf32>
    %443 = vector.broadcast %441 : vector<16x1xf32> to vector<16x256xf32>
    %444 = arith.mulf %442, %443 : vector<16x256xf32>
    %445 = vector.extract_strided_slice %439 {offsets = [1, 0], sizes = [1, 256], strides = [1, 1]} : vector<8x256xf32> to vector<1x256xf32>
    %c0_155 = arith.constant 0 : index
    %c1_156 = arith.constant 1 : index
    %446 = vector.load %arg6[%c0_155, %c1_156] : memref<16x8xf32, #tpu.memory_space<vmem>>, vector<16x1xf32>
    %447 = vector.broadcast %445 : vector<1x256xf32> to vector<16x256xf32>
    %448 = vector.broadcast %446 : vector<16x1xf32> to vector<16x256xf32>
    %449 = arith.mulf %447, %448 : vector<16x256xf32>
    %450 = vector.extract_strided_slice %439 {offsets = [2, 0], sizes = [1, 256], strides = [1, 1]} : vector<8x256xf32> to vector<1x256xf32>
    %c0_157 = arith.constant 0 : index
    %c2_158 = arith.constant 2 : index
    %451 = vector.load %arg6[%c0_157, %c2_158] : memref<16x8xf32, #tpu.memory_space<vmem>>, vector<16x1xf32>
    %452 = vector.broadcast %450 : vector<1x256xf32> to vector<16x256xf32>
    %453 = vector.broadcast %451 : vector<16x1xf32> to vector<16x256xf32>
    %454 = arith.mulf %452, %453 : vector<16x256xf32>
    %455 = arith.addf %444, %454 : vector<16x256xf32>
    %456 = vector.extract_strided_slice %439 {offsets = [3, 0], sizes = [1, 256], strides = [1, 1]} : vector<8x256xf32> to vector<1x256xf32>
    %c0_159 = arith.constant 0 : index
    %c3_160 = arith.constant 3 : index
    %457 = vector.load %arg6[%c0_159, %c3_160] : memref<16x8xf32, #tpu.memory_space<vmem>>, vector<16x1xf32>
    %458 = vector.broadcast %456 : vector<1x256xf32> to vector<16x256xf32>
    %459 = vector.broadcast %457 : vector<16x1xf32> to vector<16x256xf32>
    %460 = arith.mulf %458, %459 : vector<16x256xf32>
    %461 = arith.addf %449, %460 : vector<16x256xf32>
    %462 = vector.extract_strided_slice %439 {offsets = [4, 0], sizes = [1, 256], strides = [1, 1]} : vector<8x256xf32> to vector<1x256xf32>
    %c0_161 = arith.constant 0 : index
    %c4_162 = arith.constant 4 : index
    %463 = vector.load %arg6[%c0_161, %c4_162] : memref<16x8xf32, #tpu.memory_space<vmem>>, vector<16x1xf32>
    %464 = vector.broadcast %462 : vector<1x256xf32> to vector<16x256xf32>
    %465 = vector.broadcast %463 : vector<16x1xf32> to vector<16x256xf32>
    %466 = arith.mulf %464, %465 : vector<16x256xf32>
    %467 = arith.addf %455, %466 : vector<16x256xf32>
    %468 = vector.extract_strided_slice %439 {offsets = [5, 0], sizes = [1, 256], strides = [1, 1]} : vector<8x256xf32> to vector<1x256xf32>
    %c0_163 = arith.constant 0 : index
    %c5_164 = arith.constant 5 : index
    %469 = vector.load %arg6[%c0_163, %c5_164] : memref<16x8xf32, #tpu.memory_space<vmem>>, vector<16x1xf32>
    %470 = vector.broadcast %468 : vector<1x256xf32> to vector<16x256xf32>
    %471 = vector.broadcast %469 : vector<16x1xf32> to vector<16x256xf32>
    %472 = arith.mulf %470, %471 : vector<16x256xf32>
    %473 = arith.addf %461, %472 : vector<16x256xf32>
    %474 = vector.extract_strided_slice %439 {offsets = [6, 0], sizes = [1, 256], strides = [1, 1]} : vector<8x256xf32> to vector<1x256xf32>
    %c0_165 = arith.constant 0 : index
    %c6_166 = arith.constant 6 : index
    %475 = vector.load %arg6[%c0_165, %c6_166] : memref<16x8xf32, #tpu.memory_space<vmem>>, vector<16x1xf32>
    %476 = vector.broadcast %474 : vector<1x256xf32> to vector<16x256xf32>
    %477 = vector.broadcast %475 : vector<16x1xf32> to vector<16x256xf32>
    %478 = arith.mulf %476, %477 : vector<16x256xf32>
    %479 = arith.addf %467, %478 : vector<16x256xf32>
    %480 = vector.extract_strided_slice %439 {offsets = [7, 0], sizes = [1, 256], strides = [1, 1]} : vector<8x256xf32> to vector<1x256xf32>
    %c0_167 = arith.constant 0 : index
    %c7_168 = arith.constant 7 : index
    %481 = vector.load %arg6[%c0_167, %c7_168] : memref<16x8xf32, #tpu.memory_space<vmem>>, vector<16x1xf32>
    %482 = vector.broadcast %480 : vector<1x256xf32> to vector<16x256xf32>
    %483 = vector.broadcast %481 : vector<16x1xf32> to vector<16x256xf32>
    %484 = arith.mulf %482, %483 : vector<16x256xf32>
    %485 = arith.addf %473, %484 : vector<16x256xf32>
    %486 = arith.addf %479, %485 : vector<16x256xf32>
    %c0_169 = arith.constant 0 : index
    %c0_170 = arith.constant 0 : index
    %487 = vector.load %arg11[%c0_169, %c0_170] : memref<16x1xf32, #tpu.memory_space<vmem>>, vector<16x1xf32>
    %488 = vector.broadcast %487 : vector<16x1xf32> to vector<16x256xf32>
    %489 = arith.mulf %486, %488 : vector<16x256xf32>
    %c0_171 = arith.constant 0 : index
    %c0_172 = arith.constant 0 : index
    %490 = vector.load %arg12[%c0_171, %c0_172] : memref<16x1xf32, #tpu.memory_space<vmem>>, vector<16x1xf32>
    %491 = vector.broadcast %490 : vector<16x1xf32> to vector<16x256xf32>
    %492 = arith.addf %489, %491 : vector<16x256xf32>
    %493 = arith.negf %492 : vector<16x256xf32>
    %494 = math.exp %493 : vector<16x256xf32>
    %cst_173 = arith.constant 1.000000e+00 : f32
    %495 = vector.broadcast %cst_173 : f32 to vector<16x256xf32>
    %496 = arith.addf %495, %494 : vector<16x256xf32>
    %497 = arith.divf %495, %496 : vector<16x256xf32>
    %498 = arith.mulf %492, %497 : vector<16x256xf32>
    %499 = arith.negf %498 : vector<16x256xf32>
    %500 = math.exp %499 : vector<16x256xf32>
    %cst_174 = arith.constant 1.000000e+00 : f32
    %501 = vector.broadcast %cst_174 : f32 to vector<16x256xf32>
    %502 = arith.addf %501, %500 : vector<16x256xf32>
    %503 = arith.divf %501, %502 : vector<16x256xf32>
    %c0_175 = arith.constant 0 : index
    %c0_176 = arith.constant 0 : index
    %504 = vector.load %arg1[%c0_175, %c0_176] : memref<16x256xf32, #tpu.memory_space<vmem>>, vector<16x256xf32>
    %cst_177 = arith.constant 1.000000e+00 : f32
    %505 = vector.broadcast %cst_177 : f32 to vector<16x256xf32>
    %506 = arith.addf %503, %505 : vector<16x256xf32>
    %507 = arith.mulf %506, %504 : vector<16x256xf32>
    %c0_178 = arith.constant 0 : index
    %c0_179 = arith.constant 0 : index
    %508 = vector.load %arg13[%c0_178, %c0_179] : memref<16x256xf32, #tpu.memory_space<vmem>>, vector<16x256xf32>
    tpu.vector_store %arg13[%c0_178, %c0_179], %507 {strides = array<i32>} : memref<16x256xf32, #tpu.memory_space<vmem>>, vector<16x256xf32>,
    return
  }
  func.func @transform_0(%arg0: i32) -> (i32, i32) {
    %c0_i32 = arith.constant 0 : i32
    %c0_i32_0 = arith.constant 0 : i32
    return %arg0, %c0_i32 : i32, i32
  }
  func.func @transform_1(%arg0: i32) -> (i32, i32) {
    %c0_i32 = arith.constant 0 : i32
    %c0_i32_0 = arith.constant 0 : i32
    %c0_i32_1 = arith.constant 0 : i32
    return %c0_i32, %c0_i32_0 : i32, i32
  }
  func.func @transform_2(%arg0: i32) -> (i32, i32) {
    %c0_i32 = arith.constant 0 : i32
    %c0_i32_0 = arith.constant 0 : i32
    %c0_i32_1 = arith.constant 0 : i32
    return %c0_i32, %c0_i32_0 : i32, i32
  }
  func.func @transform_3(%arg0: i32) -> (i32, i32) {
    %c0_i32 = arith.constant 0 : i32
    %c0_i32_0 = arith.constant 0 : i32
    %c0_i32_1 = arith.constant 0 : i32
    return %c0_i32, %c0_i32_0 : i32, i32
  }
  func.func @transform_4(%arg0: i32) -> (i32, i32) {
    %c0_i32 = arith.constant 0 : i32
    %c0_i32_0 = arith.constant 0 : i32
    %c0_i32_1 = arith.constant 0 : i32
    return %c0_i32, %c0_i32_0 : i32, i32
  }
  func.func @transform_5(%arg0: i32) -> (i32, i32) {
    %c0_i32 = arith.constant 0 : i32
    %c0_i32_0 = arith.constant 0 : i32
    %c0_i32_1 = arith.constant 0 : i32
    return %c0_i32, %c0_i32_0 : i32, i32
  }
  func.func @transform_6(%arg0: i32) -> (i32, i32) {
    %c0_i32 = arith.constant 0 : i32
    %c0_i32_0 = arith.constant 0 : i32
    %c0_i32_1 = arith.constant 0 : i32
    return %c0_i32, %c0_i32_0 : i32, i32
  }
  func.func @transform_7(%arg0: i32) -> (i32, i32) {
    %c0_i32 = arith.constant 0 : i32
    %c0_i32_0 = arith.constant 0 : i32
    %c0_i32_1 = arith.constant 0 : i32
    return %c0_i32, %c0_i32_0 : i32, i32
  }
  func.func @transform_8(%arg0: i32) -> (i32, i32) {
    %c0_i32 = arith.constant 0 : i32
    %c0_i32_0 = arith.constant 0 : i32
    %c0_i32_1 = arith.constant 0 : i32
    return %c0_i32, %c0_i32_0 : i32, i32
  }
  func.func @transform_9(%arg0: i32) -> (i32, i32) {
    %c0_i32 = arith.constant 0 : i32
    %c0_i32_0 = arith.constant 0 : i32
    %c0_i32_1 = arith.constant 0 : i32
    return %c0_i32, %c0_i32_0 : i32, i32
  }
  func.func @transform_10(%arg0: i32) -> (i32, i32) {
    %c0_i32 = arith.constant 0 : i32
    %c0_i32_0 = arith.constant 0 : i32
    %c0_i32_1 = arith.constant 0 : i32
    return %c0_i32, %c0_i32_0 : i32, i32
  }
  func.func @transform_11(%arg0: i32) -> (i32, i32) {
    %c0_i32 = arith.constant 0 : i32
    %c0_i32_0 = arith.constant 0 : i32
    %c0_i32_1 = arith.constant 0 : i32
    return %c0_i32, %c0_i32_0 : i32, i32
  }
  func.func @transform_12(%arg0: i32) -> (i32, i32) {
    %c0_i32 = arith.constant 0 : i32
    %c0_i32_0 = arith.constant 0 : i32
    return %arg0, %c0_i32 : i32, i32
  }
}

</mosaic_0001>

<llo_original>
// kernel: tpu_custom_call.1
$region0: #{tpu_custom_call.1}
  #allocation0 [shape = 'u32[]', space=smem, size = 0x4, offset = 0x4, fixed_abs, tag = 'smem constant byte address 0x4 - core index']
  #allocation1 [shape = 'u32[72,128]{1,0:T(1,128)}', space=vmem, size = 0x9000, scoped, tag = 'internal scratch']
  #allocation2 [shape = 'f32[8,512]{1,0:T(8,128)}', space=vmem, size = 0x4000, scoped, tag = 'scratch operand']
  %s0 = inlined_call_operand.vmem [shape: f32[16,256], index: 0, kind: input, shape index: {}]
  %s1 = inlined_call_operand.vmem [shape: s32[1,256], index: 1, kind: input, shape index: {}]
  %s2 = inlined_call_operand.vmem [shape: s32[1,256], index: 2, kind: input, shape index: {}]
  %s3 = inlined_call_operand.vmem [shape: f32[8,16], index: 3, kind: input, shape index: {}]
  %s4 = inlined_call_operand.vmem [shape: f32[8,27], index: 4, kind: input, shape index: {}]
  %s5 = inlined_call_operand.vmem [shape: f32[16,8], index: 5, kind: input, shape index: {}]
  %s6 = inlined_call_operand.vmem [shape: f32[8,1], index: 6, kind: input, shape index: {}]
  %s7 = inlined_call_operand.vmem [shape: f32[8,1], index: 7, kind: input, shape index: {}]
  %s8 = inlined_call_operand.vmem [shape: f32[8,3], index: 8, kind: input, shape index: {}]
  %s9 = inlined_call_operand.vmem [shape: f32[8,3], index: 9, kind: input, shape index: {}]
  %s10 = inlined_call_operand.vmem [shape: f32[16,1], index: 10, kind: input, shape index: {}]
  %s11 = inlined_call_operand.vmem [shape: f32[16,1], index: 11, kind: input, shape index: {}]
  %s12 = inlined_call_operand.hbm [shape: f32[16,256], index: 12, kind: output, shape index: {}]
  %s13 = sld [smem:[#allocation0]]
  $region58: #{tpu_custom_call.1} parent=0
    _
  %s15 = ssub.s32 1, %s13
  %s16 = scalar_select 0, %s15, %s13
  $region1: #{tpu_custom_call.1} parent=0
    #allocation3 [shape = 'u8[16384]{0}', space=vmem, size = 0x4000, scoped, tag = 'output window, operand 0, single buffered']
    #allocation4 [shape = 's32[1]{0}', space=sflag, size = 0x4, scoped, tag = 'scoped memory for tpu_custom_call.1']
    %17 = vsyncpa [#allocation4], 0
    // Predicated region
    $region2: #{tpu_custom_call.1} parent=1 // pred_check
      _
    $region3: #{tpu_custom_call.1} parent=1 // pred_check_branch
      %19 = sbr.rel (0) target = $region5
    $region4: #{tpu_custom_call.1} parent=1 // pred_region
      _
    $region5: #{tpu_custom_call.1} parent=1 // pred_fallthru
      _
    // Predicated region
    $region6: #{tpu_custom_call.1} parent=1 // pred_check
      _
    $region7: #{tpu_custom_call.1} parent=1 // pred_check_branch
      %21 = sbr.rel (0) target = $region9
    $region8: #{tpu_custom_call.1} parent=1 // pred_region
      _
    $region9: #{tpu_custom_call.1} parent=1 // pred_fallthru
      _
    // Predicated region
    $region10: #{tpu_custom_call.1} parent=1 // pred_check
      _
    $region11: #{tpu_custom_call.1} parent=1 // pred_check_branch
      %23 = sbr.rel (0) target = $region13
    $region12: #{tpu_custom_call.1} parent=1 // pred_region
      _
    $region13: #{tpu_custom_call.1} parent=1 // pred_fallthru
      _
    // Predicated region
    $region14: #{tpu_custom_call.1} parent=1 // pred_check
      _
    $region15: #{tpu_custom_call.1} parent=1 // pred_check_branch
      %25 = sbr.rel (0) target = $region17
    $region16: #{tpu_custom_call.1} parent=1 // pred_region
      _
    $region17: #{tpu_custom_call.1} parent=1 // pred_fallthru
      _
    // Predicated region
    $region18: #{tpu_custom_call.1} parent=1 // pred_check
      _
    $region19: #{tpu_custom_call.1} parent=1 // pred_check_branch
      %27 = sbr.rel (0) target = $region21
    $region20: #{tpu_custom_call.1} parent=1 // pred_region
      _
    $region21: #{tpu_custom_call.1} parent=1 // pred_fallthru
      _
    // Predicated region
    $region22: #{tpu_custom_call.1} parent=1 // pred_check
      _
    $region23: #{tpu_custom_call.1} parent=1 // pred_check_branch
      %29 = sbr.rel (0) target = $region25
    $region24: #{tpu_custom_call.1} parent=1 // pred_region
      _
    $region25: #{tpu_custom_call.1} parent=1 // pred_fallthru
      _
    // Predicated region
    $region26: #{tpu_custom_call.1} parent=1 // pred_check
      _
    $region27: #{tpu_custom_call.1} parent=1 // pred_check_branch
      %31 = sbr.rel (0) target = $region29
    $region28: #{tpu_custom_call.1} parent=1 // pred_region
      _
    $region29: #{tpu_custom_call.1} parent=1 // pred_fallthru
      _
    // Predicated region
    $region30: #{tpu_custom_call.1} parent=1 // pred_check
      _
    $region31: #{tpu_custom_call.1} parent=1 // pred_check_branch
      %33 = sbr.rel (0) target = $region33
    $region32: #{tpu_custom_call.1} parent=1 // pred_region
      _
    $region33: #{tpu_custom_call.1} parent=1 // pred_fallthru
      _
    // Predicated region
    $region34: #{tpu_custom_call.1} parent=1 // pred_check
      _
    $region35: #{tpu_custom_call.1} parent=1 // pred_check_branch
      %35 = sbr.rel (0) target = $region37
    $region36: #{tpu_custom_call.1} parent=1 // pred_region
      _
    $region37: #{tpu_custom_call.1} parent=1 // pred_fallthru
      _
    // Predicated region
    $region38: #{tpu_custom_call.1} parent=1 // pred_check
      _
    $region39: #{tpu_custom_call.1} parent=1 // pred_check_branch
      %37 = sbr.rel (0) target = $region41
    $region40: #{tpu_custom_call.1} parent=1 // pred_region
      _
    $region41: #{tpu_custom_call.1} parent=1 // pred_fallthru
      _
    // Predicated region
    $region42: #{tpu_custom_call.1} parent=1 // pred_check
      _
    $region43: #{tpu_custom_call.1} parent=1 // pred_check_branch
      %39 = sbr.rel (0) target = $region45
    $region44: #{tpu_custom_call.1} parent=1 // pred_region
      _
    $region45: #{tpu_custom_call.1} parent=1 // pred_fallthru
      _
    // Predicated region
    $region46: #{tpu_custom_call.1} parent=1 // pred_check
      _
    $region47: #{tpu_custom_call.1} parent=1 // pred_check_branch
      %41 = sbr.rel (0) target = $region49
    $region48: #{tpu_custom_call.1} parent=1 // pred_region
      _
    $region49: #{tpu_custom_call.1} parent=1 // pred_fallthru
      _
    %v42 = vld [vmem:[%s0] sm:$0xff]
    %v43 = vld [vmem:[%s0 + $0x8] sm:$0xff]
    %v44 = vld [vmem:[%s0 + $0x10] sm:$0xff]
    %v45 = vld [vmem:[%s0 + $0x18] sm:$0xff]
    %v46 = vld [vmem:[%s3] sm:$0xff]
    %v47 = vperm.slane %v42, 0
    %v48 = vperm.slane %v43, 0
    %50 = vset.pattern.permute.xlu0 0
    %51 = vperm.xlu0 %50, %v46
    %v52 = vpop.permute.xlu0 %51
    %v54 = vmul.f32 %v47, %v52
    %v55 = vmul.f32 %v48, %v52
    %v56 = vperm.slane %v42, 1
    %v57 = vperm.slane %v43, 1
    %58 = vset.pattern.permute.xlu0 1
    %59 = vperm.xlu0 %58, %v46
    %v60 = vpop.permute.xlu0 %59
    %v62 = vmul.f32 %v56, %v60
    %v63 = vmul.f32 %v57, %v60
    %v64 = vperm.slane %v42, 2
    %v65 = vperm.slane %v43, 2
    %66 = vset.pattern.permute.xlu0 2
    %67 = vperm.xlu0 %66, %v46
    %v68 = vpop.permute.xlu0 %67
    %v70 = vmul.f32 %v64, %v68
    %v71 = vmul.f32 %v65, %v68
    %v72 = vadd.f32 %v54, %v70
    %v73 = vadd.f32 %v55, %v71
    %v74 = vperm.slane %v42, 3
    %v75 = vperm.slane %v43, 3
    %76 = vset.pattern.permute.xlu0 3
    %77 = vperm.xlu0 %76, %v46
    %v78 = vpop.permute.xlu0 %77
    %v80 = vmul.f32 %v74, %v78
    %v81 = vmul.f32 %v75, %v78
    %v82 = vadd.f32 %v62, %v80
    %v83 = vadd.f32 %v63, %v81
    %v84 = vperm.slane %v42, 4
    %v85 = vperm.slane %v43, 4
    %86 = vset.pattern.permute.xlu0 4
    %87 = vperm.xlu0 %86, %v46
    %v88 = vpop.permute.xlu0 %87
    %v90 = vmul.f32 %v84, %v88
    %v91 = vmul.f32 %v85, %v88
    %v92 = vadd.f32 %v72, %v90
    %v93 = vadd.f32 %v73, %v91
    %v94 = vperm.slane %v42, 5
    %v95 = vperm.slane %v43, 5
    %96 = vset.pattern.permute.xlu0 5
    %97 = vperm.xlu0 %96, %v46
    %v98 = vpop.permute.xlu0 %97
    %v100 = vmul.f32 %v94, %v98
    %v101 = vmul.f32 %v95, %v98
    %v102 = vadd.f32 %v82, %v100
    %v103 = vadd.f32 %v83, %v101
    %v104 = vperm.slane %v42, 6
    %v105 = vperm.slane %v43, 6
    %106 = vset.pattern.permute.xlu0 6
    %107 = vperm.xlu0 %106, %v46
    %v108 = vpop.permute.xlu0 %107
    %v110 = vmul.f32 %v104, %v108
    %v111 = vmul.f32 %v105, %v108
    %v112 = vadd.f32 %v92, %v110
    %v113 = vadd.f32 %v93, %v111
    %v114 = vperm.slane %v42, 7
    %v115 = vperm.slane %v43, 7
    %116 = vset.pattern.permute.xlu0 7
    %117 = vperm.xlu0 %116, %v46
    %v118 = vpop.permute.xlu0 %117
    %v120 = vmul.f32 %v114, %v118
    %v121 = vmul.f32 %v115, %v118
    %v122 = vadd.f32 %v102, %v120
    %v123 = vadd.f32 %v103, %v121
    %v124 = vperm.slane %v44, 0
    %v125 = vperm.slane %v45, 0
    %126 = vset.pattern.permute.xlu0 8
    %127 = vperm.xlu0 %126, %v46
    %v128 = vpop.permute.xlu0 %127
    %v130 = vmul.f32 %v124, %v128
    %v131 = vmul.f32 %v125, %v128
    %v132 = vadd.f32 %v112, %v130
    %v133 = vadd.f32 %v113, %v131
    %v134 = vperm.slane %v44, 1
    %v135 = vperm.slane %v45, 1
    %136 = vset.pattern.permute.xlu0 9
    %137 = vperm.xlu0 %136, %v46
    %v138 = vpop.permute.xlu0 %137
    %v140 = vmul.f32 %v134, %v138
    %v141 = vmul.f32 %v135, %v138
    %v142 = vadd.f32 %v122, %v140
    %v143 = vadd.f32 %v123, %v141
    %v144 = vperm.slane %v44, 2
    %v145 = vperm.slane %v45, 2
    %146 = vset.pattern.permute.xlu0 10
    %147 = vperm.xlu0 %146, %v46
    %v148 = vpop.permute.xlu0 %147
    %v150 = vmul.f32 %v144, %v148
    %v151 = vmul.f32 %v145, %v148
    %v152 = vadd.f32 %v132, %v150
    %v153 = vadd.f32 %v133, %v151
    %v154 = vperm.slane %v44, 3
    %v155 = vperm.slane %v45, 3
    %156 = vset.pattern.permute.xlu0 11
    %157 = vperm.xlu0 %156, %v46
    %v158 = vpop.permute.xlu0 %157
    %v160 = vmul.f32 %v154, %v158
    %v161 = vmul.f32 %v155, %v158
    %v162 = vadd.f32 %v142, %v160
    %v163 = vadd.f32 %v143, %v161
    %v164 = vperm.slane %v44, 4
    %v165 = vperm.slane %v45, 4
    %166 = vset.pattern.permute.xlu0 12
    %167 = vperm.xlu0 %166, %v46
    %v168 = vpop.permute.xlu0 %167
    %v170 = vmul.f32 %v164, %v168
    %v171 = vmul.f32 %v165, %v168
    %v172 = vadd.f32 %v152, %v170
    %v173 = vadd.f32 %v153, %v171
    %v174 = vperm.slane %v44, 5
    %v175 = vperm.slane %v45, 5
    %176 = vset.pattern.permute.xlu0 13
    %177 = vperm.xlu0 %176, %v46
    %v178 = vpop.permute.xlu0 %177
    %v180 = vmul.f32 %v174, %v178
    %v181 = vmul.f32 %v175, %v178
    %v182 = vadd.f32 %v162, %v180
    %v183 = vadd.f32 %v163, %v181
    %v184 = vperm.slane %v44, 6
    %v185 = vperm.slane %v45, 6
    %186 = vset.pattern.permute.xlu0 14
    %187 = vperm.xlu0 %186, %v46
    %v188 = vpop.permute.xlu0 %187
    %v190 = vmul.f32 %v184, %v188
    %v191 = vmul.f32 %v185, %v188
    %v192 = vadd.f32 %v172, %v190
    %v193 = vadd.f32 %v173, %v191
    %v194 = vperm.slane %v44, 7
    %v195 = vperm.slane %v45, 7
    %196 = vset.pattern.permute.xlu0 15
    %197 = vperm.xlu0 %196, %v46
    %v198 = vpop.permute.xlu0 %197
    %v200 = vmul.f32 %v194, %v198
    %v201 = vmul.f32 %v195, %v198
    %v202 = vadd.f32 %v182, %v200
    %v203 = vadd.f32 %v183, %v201
    %v204 = vadd.f32 %v192, %v202
    %v205 = vadd.f32 %v193, %v203
    %v206 = vld [vmem:[%s6] sm:$0xff]
    %208 = vset.pattern.permute.xlu0 0
    %209 = vperm.xlu0 %208, %v206
    %v210 = vpop.permute.xlu0 %209
    %v212 = vmul.f32 %v204, %v210
    %v213 = vmul.f32 %v205, %v210
    %v214 = vld [vmem:[%s7] sm:$0xff]
    %216 = vset.pattern.permute.xlu0 0
    %217 = vperm.xlu0 %216, %v214
    %v218 = vpop.permute.xlu0 %217
    %v220 = vadd.f32 %v212, %v218
    %v221 = vadd.f32 %v213, %v218
    %v222 = vxor.u32 %v220, 2147483648
    %v223 = vxor.u32 %v221, 2147483648
    %v224 = vmul.f32 %v222, 1.442695
    %v225 = vpow.pop %v224
    %v226 = vmul.f32 %v223, 1.442695
    %v227 = vpow.pop %v226
    %v228 = vadd.f32 %v225, 1.0
    %v229 = vadd.f32 %v227, 1.0
    %v230 = vrcp.pop %v228
    %v231 = vmul.f32 %v228, %v230
    %v232 = vsub.f32 1.0, %v231
    %v233 = vmul.f32 %v230, %v232
    %v234 = vadd.f32 %v230, %v233
    %vm235 = vweird.f32 %v228
    %vm236 = vweird.f32 %v230
    %vm237 = vmor %vm235, %vm236
    %v238 = vsel %vm237, %v230, %v234
    %v239 = vand.u32 2147483647, %v228
    %vm240 = vcmp.eq.f32.partialorder %v239, 8.507059e+37
    %v241 = vand.u32 %v228, 2147483648
    %v242 = vor.u32 1.1754944e-38, %v241
    %v243 = vsel %vm240, %v242, %v238
    %v244 = vmul.f32 1.0, %v243
    %v245 = vrcp.pop %v229
    %v246 = vmul.f32 %v229, %v245
    %v247 = vsub.f32 1.0, %v246
    %v248 = vmul.f32 %v245, %v247
    %v249 = vadd.f32 %v245, %v248
    %vm250 = vweird.f32 %v229
    %vm251 = vweird.f32 %v245
    %vm252 = vmor %vm250, %vm251
    %v253 = vsel %vm252, %v245, %v249
    %v254 = vand.u32 2147483647, %v229
    %vm255 = vcmp.eq.f32.partialorder %v254, 8.507059e+37
    %v256 = vand.u32 %v229, 2147483648
    %v257 = vor.u32 1.1754944e-38, %v256
    %v258 = vsel %vm255, %v257, %v253
    %v259 = vmul.f32 1.0, %v258
    %v260 = vmul.f32 %v220, %v244
    %v261 = vmul.f32 %v221, %v259
    %vm262 = vcmask 1048064
    %263 = vst.msk [vmem:[#allocation2] sm:$0xff] %vm262, 0.0
    %vm264 = vcmask 523264
    %265 = vst.msk [vmem:[#allocation2 + $0x18] sm:$0xff] %vm264, 0.0
    %266 = vst [vmem:[#allocation2 + $0x8] sm:$0xff] %v260
    %267 = vst [vmem:[#allocation2 + $0x10] sm:$0xff] %v261
    %v268 = vld [vmem:[%s1] sm:$0x3]
    %v269 = vld [vmem:[%s2] sm:$0x3]
    %vm270 = vcmp.lt.s32.totalorder %v268, 15
    %vm271 = vcmp.ge.s32.totalorder %v268, 1
    %vm272 = vcmp.lt.s32.totalorder %v268, 14
    %vm273 = vcmp.ge.s32.totalorder %v268, 2
    %vm274 = vcmp.lt.s32.totalorder %v268, 13
    %vm275 = vcmp.ge.s32.totalorder %v268, 3
    %vm276 = vcmp.lt.s32.totalorder %v269, 15
    %vm277 = vcmp.ge.s32.totalorder %v269, 1
    %vm278 = vmand %vm271, %vm277
    %vm279 = vmand %vm270, %vm277
    %vm280 = vmand %vm271, %vm276
    %vm281 = vmand %vm270, %vm276
    %v282 = vld [vmem:[#allocation2] sm:$0xff]
    %v283 = vld [vmem:[#allocation2 + $0x8] sm:$0xff]
    %v284 = vld [vmem:[#allocation2 + $0x10] sm:$0xff]
    %v285 = vsel %vm271, 1, 0
    %v286 = vperm.slane %v285, 0
    %v287 = vperm.slane %v285, 1
    %vm288 = vcmp.eq.s32.totalorder %v286, 1
    %vm289 = vcmp.eq.s32.totalorder %v287, 1
    %293 = vrot.lane.b32.xlu0 %v282, 17
    %v294 = vpop.permute.xlu0 %293
    %295 = vrot.lane.b32.xlu0 %v283, 17
    %v296 = vpop.permute.xlu0 %295
    %297 = vrot.lane.b32.xlu0 %v284, 17
    %v298 = vpop.permute.xlu0 %297
    %vm299 = vcmask 138240
    %v300 = vsel %vm299, %v294, %v296
    %v301 = vsel %vm299, %v296, %v298
    %v304 = vsel %vm288, %v300, 0.0
    %v305 = vsel %vm289, %v301, 0.0
    %v306 = vld [vmem:[%s4] sm:$0xff]
    %308 = vset.pattern.permute.xlu0 0
    %309 = vperm.xlu0 %308, %v306
    %v310 = vpop.permute.xlu0 %309
    %v312 = vmul.f32 %v304, %v310
    %v313 = vmul.f32 %v305, %v310
    %v314 = vadd.f32 %v312, 0.0
    %v315 = vadd.f32 %v313, 0.0
    %v316 = vadd.f32 %v304, 0.0
    %v317 = vadd.f32 %v305, 0.0
    %v318 = vsel %vm278, 1, 0
    %v319 = vperm.slane %v318, 0
    %v320 = vperm.slane %v318, 1
    %vm321 = vcmp.eq.s32.totalorder %v319, 1
    %vm322 = vcmp.eq.s32.totalorder %v320, 1
    %v323 = vsel %vm321, %v300, -3e+38
    %v324 = vsel %vm322, %v301, -3e+38
    %v325 = vmax.f32 %v323, -3e+38
    %v326 = vmax.f32 %v324, -3e+38
    %327 = vset.pattern.permute.xlu0 1
    %328 = vperm.xlu0 %327, %v306
    %v329 = vpop.permute.xlu0 %328
    %v331 = vmul.f32 %v282, %v329
    %v332 = vmul.f32 %v283, %v329
    %v333 = vmul.f32 %v284, %v329
    %337 = vrot.lane.b32.xlu0 %v331, 16
    %v338 = vpop.permute.xlu0 %337
    %339 = vrot.lane.b32.xlu0 %v332, 16
    %v340 = vpop.permute.xlu0 %339
    %341 = vrot.lane.b32.xlu0 %v333, 16
    %v342 = vpop.permute.xlu0 %341
    %vm343 = vcmask 130048
    %v344 = vsel %vm343, %v338, %v340
    %v345 = vsel %vm343, %v340, %v342
    %v348 = vadd.f32 %v314, %v344
    %v349 = vadd.f32 %v315, %v345
    %350 = vrot.lane.b32.xlu0 %v282, 16
    %v351 = vpop.permute.xlu0 %350
    %352 = vrot.lane.b32.xlu0 %v283, 16
    %v353 = vpop.permute.xlu0 %352
    %354 = vrot.lane.b32.xlu0 %v284, 16
    %v355 = vpop.permute.xlu0 %354
    %v356 = vsel %vm343, %v351, %v353
    %v357 = vsel %vm343, %v353, %v355
    %v360 = vadd.f32 %v316, %v356
    %v361 = vadd.f32 %v317, %v357
    %v362 = vsel %vm277, 1, 0
    %v363 = vperm.slane %v362, 0
    %v364 = vperm.slane %v362, 1
    %vm365 = vcmp.eq.s32.totalorder %v363, 1
    %vm366 = vcmp.eq.s32.totalorder %v364, 1
    %v367 = vsel %vm365, %v356, -3e+38
    %v368 = vsel %vm366, %v357, -3e+38
    %v369 = vmax.f32 %v325, %v367
    %v370 = vmax.f32 %v326, %v368
    %v371 = vsel %vm270, 1, 0
    %v372 = vperm.slane %v371, 0
    %v373 = vperm.slane %v371, 1
    %vm374 = vcmp.eq.s32.totalorder %v372, 1
    %vm375 = vcmp.eq.s32.totalorder %v373, 1
    %376 = vrot.lane.b32.xlu0 %v282, 15
    %v377 = vpop.permute.xlu0 %376
    %378 = vrot.lane.b32.xlu0 %v283, 15
    %v379 = vpop.permute.xlu0 %378
    %380 = vrot.lane.b32.xlu0 %v284, 15
    %v381 = vpop.permute.xlu0 %380
    %vm382 = vcmask 121856
    %v383 = vsel %vm382, %v377, %v379
    %v384 = vsel %vm382, %v379, %v381
    %v387 = vsel %vm374, %v383, 0.0
    %v388 = vsel %vm375, %v384, 0.0
    %389 = vset.pattern.permute.xlu0 2
    %390 = vperm.xlu0 %389, %v306
    %v391 = vpop.permute.xlu0 %390
    %v393 = vmul.f32 %v387, %v391
    %v394 = vmul.f32 %v388, %v391
    %v395 = vadd.f32 %v348, %v393
    %v396 = vadd.f32 %v349, %v394
    %v397 = vadd.f32 %v360, %v387
    %v398 = vadd.f32 %v361, %v388
    %v399 = vsel %vm279, 1, 0
    %v400 = vperm.slane %v399, 0
    %v401 = vperm.slane %v399, 1
    %vm402 = vcmp.eq.s32.totalorder %v400, 1
    %vm403 = vcmp.eq.s32.totalorder %v401, 1
    %v404 = vsel %vm402, %v383, -3e+38
    %v405 = vsel %vm403, %v384, -3e+38
    %v406 = vmax.f32 %v369, %v404
    %v407 = vmax.f32 %v370, %v405
    %408 = vrot.lane.b32.xlu0 %v282, 1
    %v409 = vpop.permute.xlu0 %408
    %410 = vrot.lane.b32.xlu0 %v283, 1
    %v411 = vpop.permute.xlu0 %410
    %412 = vrot.lane.b32.xlu0 %v284, 1
    %v413 = vpop.permute.xlu0 %412
    %vm414 = vcmask 7168
    %v415 = vsel %vm414, %v409, %v411
    %v416 = vsel %vm414, %v411, %v413
    %v419 = vsel %vm288, %v415, 0.0
    %v420 = vsel %vm289, %v416, 0.0
    %421 = vset.pattern.permute.xlu0 3
    %422 = vperm.xlu0 %421, %v306
    %v423 = vpop.permute.xlu0 %422
    %v425 = vmul.f32 %v419, %v423
    %v426 = vmul.f32 %v420, %v423
    %v427 = vadd.f32 %v395, %v425
    %v428 = vadd.f32 %v396, %v426
    %v429 = vadd.f32 %v397, %v419
    %v430 = vadd.f32 %v398, %v420
    %v431 = vsel %vm288, %v415, -3e+38
    %v432 = vsel %vm289, %v416, -3e+38
    %v433 = vmax.f32 %v406, %v431
    %v434 = vmax.f32 %v407, %v432
    %435 = vset.pattern.permute.xlu0 4
    %436 = vperm.xlu0 %435, %v306
    %v437 = vpop.permute.xlu0 %436
    %v439 = vmul.f32 %v283, %v437
    %v440 = vmul.f32 %v284, %v437
    %v441 = vadd.f32 %v427, %v439
    %v442 = vadd.f32 %v428, %v440
    %v443 = vadd.f32 %v429, %v283
    %v444 = vadd.f32 %v430, %v284
    %v445 = vmax.f32 %v433, %v283
    %v446 = vmax.f32 %v434, %v284
    %v447 = vld [vmem:[#allocation2 + $0x8] sm:$0xff]
    %v448 = vld [vmem:[#allocation2 + $0x10] sm:$0xff]
    %v449 = vld [vmem:[#allocation2 + $0x18] sm:$0xff]
    %453 = vrot.lane.b32.xlu0 %v447, 127
    %v454 = vpop.permute.xlu0 %453
    %455 = vrot.lane.b32.xlu0 %v448, 127
    %v456 = vpop.permute.xlu0 %455
    %457 = vrot.lane.b32.xlu0 %v449, 127
    %v458 = vpop.permute.xlu0 %457
    %vm459 = vcmask 1039360
    %v460 = vsel %vm459, %v454, %v456
    %v461 = vsel %vm459, %v456, %v458
    %v464 = vsel %vm374, %v460, 0.0
    %v465 = vsel %vm375, %v461, 0.0
    %466 = vset.pattern.permute.xlu0 5
    %467 = vperm.xlu0 %466, %v306
    %v468 = vpop.permute.xlu0 %467
    %v470 = vmul.f32 %v464, %v468
    %v471 = vmul.f32 %v465, %v468
    %v472 = vadd.f32 %v441, %v470
    %v473 = vadd.f32 %v442, %v471
    %v474 = vadd.f32 %v443, %v464
    %v475 = vadd.f32 %v444, %v465
    %v476 = vsel %vm374, %v460, -3e+38
    %v477 = vsel %vm375, %v461, -3e+38
    %v478 = vmax.f32 %v445, %v476
    %v479 = vmax.f32 %v446, %v477
    %480 = vrot.lane.b32.xlu0 %v447, 113
    %v481 = vpop.permute.xlu0 %480
    %482 = vrot.lane.b32.xlu0 %v448, 113
    %v483 = vpop.permute.xlu0 %482
    %484 = vrot.lane.b32.xlu0 %v449, 113
    %v485 = vpop.permute.xlu0 %484
    %vm486 = vcmask 924672
    %v487 = vsel %vm486, %v481, %v483
    %v488 = vsel %vm486, %v483, %v485
    %v491 = vsel %vm288, %v487, 0.0
    %v492 = vsel %vm289, %v488, 0.0
    %493 = vset.pattern.permute.xlu0 6
    %494 = vperm.xlu0 %493, %v306
    %v495 = vpop.permute.xlu0 %494
    %v497 = vmul.f32 %v491, %v495
    %v498 = vmul.f32 %v492, %v495
    %v499 = vadd.f32 %v472, %v497
    %v500 = vadd.f32 %v473, %v498
    %v501 = vadd.f32 %v474, %v491
    %v502 = vadd.f32 %v475, %v492
    %v503 = vsel %vm280, 1, 0
    %v504 = vperm.slane %v503, 0
    %v505 = vperm.slane %v503, 1
    %vm506 = vcmp.eq.s32.totalorder %v504, 1
    %vm507 = vcmp.eq.s32.totalorder %v505, 1
    %v508 = vsel %vm506, %v487, -3e+38
    %v509 = vsel %vm507, %v488, -3e+38
    %v510 = vmax.f32 %v478, %v508
    %v511 = vmax.f32 %v479, %v509
    %512 = vset.pattern.permute.xlu0 7
    %513 = vperm.xlu0 %512, %v306
    %v514 = vpop.permute.xlu0 %513
    %v516 = vmul.f32 %v447, %v514
    %v517 = vmul.f32 %v448, %v514
    %v518 = vmul.f32 %v449, %v514
    %522 = vrot.lane.b32.xlu0 %v516, 112
    %v523 = vpop.permute.xlu0 %522
    %524 = vrot.lane.b32.xlu0 %v517, 112
    %v525 = vpop.permute.xlu0 %524
    %526 = vrot.lane.b32.xlu0 %v518, 112
    %v527 = vpop.permute.xlu0 %526
    %vm528 = vcmask 916480
    %v529 = vsel %vm528, %v523, %v525
    %v530 = vsel %vm528, %v525, %v527
    %v533 = vadd.f32 %v499, %v529
    %v534 = vadd.f32 %v500, %v530
    %535 = vrot.lane.b32.xlu0 %v447, 112
    %v536 = vpop.permute.xlu0 %535
    %537 = vrot.lane.b32.xlu0 %v448, 112
    %v538 = vpop.permute.xlu0 %537
    %539 = vrot.lane.b32.xlu0 %v449, 112
    %v540 = vpop.permute.xlu0 %539
    %v541 = vsel %vm528, %v536, %v538
    %v542 = vsel %vm528, %v538, %v540
    %v545 = vadd.f32 %v501, %v541
    %v546 = vadd.f32 %v502, %v542
    %v547 = vsel %vm276, 1, 0
    %v548 = vperm.slane %v547, 0
    %v549 = vperm.slane %v547, 1
    %vm550 = vcmp.eq.s32.totalorder %v548, 1
    %vm551 = vcmp.eq.s32.totalorder %v549, 1
    %v552 = vsel %vm550, %v541, -3e+38
    %v553 = vsel %vm551, %v542, -3e+38
    %v554 = vmax.f32 %v510, %v552
    %v555 = vmax.f32 %v511, %v553
    %556 = vrot.lane.b32.xlu0 %v447, 111
    %v557 = vpop.permute.xlu0 %556
    %558 = vrot.lane.b32.xlu0 %v448, 111
    %v559 = vpop.permute.xlu0 %558
    %560 = vrot.lane.b32.xlu0 %v449, 111
    %v561 = vpop.permute.xlu0 %560
    %vm562 = vcmask 908288
    %v563 = vsel %vm562, %v557, %v559
    %v564 = vsel %vm562, %v559, %v561
    %v567 = vsel %vm374, %v563, 0.0
    %v568 = vsel %vm375, %v564, 0.0
    %569 = vset.pattern.permute.xlu0 8
    %570 = vperm.xlu0 %569, %v306
    %v571 = vpop.permute.xlu0 %570
    %v573 = vmul.f32 %v567, %v571
    %v574 = vmul.f32 %v568, %v571
    %v575 = vadd.f32 %v533, %v573
    %v576 = vadd.f32 %v534, %v574
    %v577 = vadd.f32 %v545, %v567
    %v578 = vadd.f32 %v546, %v568
    %v579 = vsel %vm281, 1, 0
    %v580 = vperm.slane %v579, 0
    %v581 = vperm.slane %v579, 1
    %vm582 = vcmp.eq.s32.totalorder %v580, 1
    %vm583 = vcmp.eq.s32.totalorder %v581, 1
    %v584 = vsel %vm582, %v563, -3e+38
    %v585 = vsel %vm583, %v564, -3e+38
    %v586 = vmax.f32 %v554, %v584
    %v587 = vmax.f32 %v555, %v585
    %v588 = vld [vmem:[%s8] sm:$0xff]
    %590 = vset.pattern.permute.xlu0 0
    %591 = vperm.xlu0 %590, %v588
    %v592 = vpop.permute.xlu0 %591
    %v594 = vmul.f32 %v575, %v592
    %v595 = vmul.f32 %v576, %v592
    %v596 = vld [vmem:[%s9] sm:$0xff]
    %598 = vset.pattern.permute.xlu0 0
    %599 = vperm.xlu0 %598, %v596
    %v600 = vpop.permute.xlu0 %599
    %v602 = vadd.f32 %v594, %v600
    %v603 = vadd.f32 %v595, %v600
    %v604 = vxor.u32 %v602, 2147483648
    %v605 = vxor.u32 %v603, 2147483648
    %v606 = vmul.f32 %v604, 1.442695
    %v607 = vpow.pop %v606
    %v608 = vmul.f32 %v605, 1.442695
    %v609 = vpow.pop %v608
    %v610 = vadd.f32 %v607, 1.0
    %v611 = vadd.f32 %v609, 1.0
    %v612 = vrcp.pop %v610
    %v613 = vmul.f32 %v610, %v612
    %v614 = vsub.f32 1.0, %v613
    %v615 = vmul.f32 %v612, %v614
    %v616 = vadd.f32 %v612, %v615
    %vm617 = vweird.f32 %v610
    %vm618 = vweird.f32 %v612
    %vm619 = vmor %vm617, %vm618
    %v620 = vsel %vm619, %v612, %v616
    %v621 = vand.u32 2147483647, %v610
    %vm622 = vcmp.eq.f32.partialorder %v621, 8.507059e+37
    %v623 = vand.u32 %v610, 2147483648
    %v624 = vor.u32 1.1754944e-38, %v623
    %v625 = vsel %vm622, %v624, %v620
    %v626 = vmul.f32 1.0, %v625
    %v627 = vrcp.pop %v611
    %v628 = vmul.f32 %v611, %v627
    %v629 = vsub.f32 1.0, %v628
    %v630 = vmul.f32 %v627, %v629
    %v631 = vadd.f32 %v627, %v630
    %vm632 = vweird.f32 %v611
    %vm633 = vweird.f32 %v627
    %vm634 = vmor %vm632, %vm633
    %v635 = vsel %vm634, %v627, %v631
    %v636 = vand.u32 2147483647, %v611
    %vm637 = vcmp.eq.f32.partialorder %v636, 8.507059e+37
    %v638 = vand.u32 %v611, 2147483648
    %v639 = vor.u32 1.1754944e-38, %v638
    %v640 = vsel %vm637, %v639, %v635
    %v641 = vmul.f32 1.0, %v640
    %v642 = vmul.f32 %v602, %v626
    %v643 = vmul.f32 %v603, %v641
    %v644 = vadd.f32 %v642, 0.0
    %v645 = vadd.f32 %v643, 0.0
    %v646 = vsel %vm273, 1, 0
    %v647 = vperm.slane %v646, 0
    %v648 = vperm.slane %v646, 1
    %vm649 = vcmp.eq.s32.totalorder %v647, 1
    %vm650 = vcmp.eq.s32.totalorder %v648, 1
    %651 = vrot.lane.b32.xlu0 %v282, 34
    %v652 = vpop.permute.xlu0 %651
    %653 = vrot.lane.b32.xlu0 %v283, 34
    %v654 = vpop.permute.xlu0 %653
    %655 = vrot.lane.b32.xlu0 %v284, 34
    %v656 = vpop.permute.xlu0 %655
    %vm657 = vcmask 277504
    %v658 = vsel %vm657, %v652, %v654
    %v659 = vsel %vm657, %v654, %v656
    %v662 = vsel %vm649, %v658, 0.0
    %v663 = vsel %vm650, %v659, 0.0
    %664 = vset.pattern.permute.xlu0 9
    %665 = vperm.xlu0 %664, %v306
    %v666 = vpop.permute.xlu0 %665
    %v668 = vmul.f32 %v662, %v666
    %v669 = vmul.f32 %v663, %v666
    %v670 = vadd.f32 %v668, 0.0
    %v671 = vadd.f32 %v669, 0.0
    %672 = vset.pattern.permute.xlu0 10
    %673 = vperm.xlu0 %672, %v306
    %v674 = vpop.permute.xlu0 %673
    %v676 = vmul.f32 %v282, %v674
    %v677 = vmul.f32 %v283, %v674
    %v678 = vmul.f32 %v284, %v674
    %682 = vrot.lane.b32.xlu0 %v676, 32
    %v683 = vpop.permute.xlu0 %682
    %684 = vrot.lane.b32.xlu0 %v677, 32
    %v685 = vpop.permute.xlu0 %684
    %686 = vrot.lane.b32.xlu0 %v678, 32
    %v687 = vpop.permute.xlu0 %686
    %vm688 = vcmask 261120
    %v689 = vsel %vm688, %v683, %v685
    %v690 = vsel %vm688, %v685, %v687
    %v693 = vadd.f32 %v670, %v689
    %v694 = vadd.f32 %v671, %v690
    %v695 = vsel %vm272, 1, 0
    %v696 = vperm.slane %v695, 0
    %v697 = vperm.slane %v695, 1
    %vm698 = vcmp.eq.s32.totalorder %v696, 1
    %vm699 = vcmp.eq.s32.totalorder %v697, 1
    %700 = vrot.lane.b32.xlu0 %v282, 30
    %v701 = vpop.permute.xlu0 %700
    %702 = vrot.lane.b32.xlu0 %v283, 30
    %v703 = vpop.permute.xlu0 %702
    %704 = vrot.lane.b32.xlu0 %v284, 30
    %v705 = vpop.permute.xlu0 %704
    %vm706 = vcmask 244736
    %v707 = vsel %vm706, %v701, %v703
    %v708 = vsel %vm706, %v703, %v705
    %v711 = vsel %vm698, %v707, 0.0
    %v712 = vsel %vm699, %v708, 0.0
    %713 = vset.pattern.permute.xlu0 11
    %714 = vperm.xlu0 %713, %v306
    %v715 = vpop.permute.xlu0 %714
    %v717 = vmul.f32 %v711, %v715
    %v718 = vmul.f32 %v712, %v715
    %v719 = vadd.f32 %v693, %v717
    %v720 = vadd.f32 %v694, %v718
    %721 = vrot.lane.b32.xlu0 %v282, 2
    %v722 = vpop.permute.xlu0 %721
    %723 = vrot.lane.b32.xlu0 %v283, 2
    %v724 = vpop.permute.xlu0 %723
    %725 = vrot.lane.b32.xlu0 %v284, 2
    %v726 = vpop.permute.xlu0 %725
    %vm727 = vcmask 15360
    %v728 = vsel %vm727, %v722, %v724
    %v729 = vsel %vm727, %v724, %v726
    %v732 = vsel %vm649, %v728, 0.0
    %v733 = vsel %vm650, %v729, 0.0
    %734 = vset.pattern.permute.xlu0 12
    %735 = vperm.xlu0 %734, %v306
    %v736 = vpop.permute.xlu0 %735
    %v738 = vmul.f32 %v732, %v736
    %v739 = vmul.f32 %v733, %v736
    %v740 = vadd.f32 %v719, %v738
    %v741 = vadd.f32 %v720, %v739
    %742 = vset.pattern.permute.xlu0 13
    %743 = vperm.xlu0 %742, %v306
    %v744 = vpop.permute.xlu0 %743
    %v746 = vmul.f32 %v283, %v744
    %v747 = vmul.f32 %v284, %v744
    %v748 = vadd.f32 %v740, %v746
    %v749 = vadd.f32 %v741, %v747
    %750 = vrot.lane.b32.xlu0 %v447, 126
    %v751 = vpop.permute.xlu0 %750
    %752 = vrot.lane.b32.xlu0 %v448, 126
    %v753 = vpop.permute.xlu0 %752
    %754 = vrot.lane.b32.xlu0 %v449, 126
    %v755 = vpop.permute.xlu0 %754
    %vm756 = vcmask 1031168
    %v757 = vsel %vm756, %v751, %v753
    %v758 = vsel %vm756, %v753, %v755
    %v761 = vsel %vm698, %v757, 0.0
    %v762 = vsel %vm699, %v758, 0.0
    %763 = vset.pattern.permute.xlu0 14
    %764 = vperm.xlu0 %763, %v306
    %v765 = vpop.permute.xlu0 %764
    %v767 = vmul.f32 %v761, %v765
    %v768 = vmul.f32 %v762, %v765
    %v769 = vadd.f32 %v748, %v767
    %v770 = vadd.f32 %v749, %v768
    %771 = vrot.lane.b32.xlu0 %v447, 98
    %v772 = vpop.permute.xlu0 %771
    %773 = vrot.lane.b32.xlu0 %v448, 98
    %v774 = vpop.permute.xlu0 %773
    %775 = vrot.lane.b32.xlu0 %v449, 98
    %v776 = vpop.permute.xlu0 %775
    %vm777 = vcmask 801792
    %v778 = vsel %vm777, %v772, %v774
    %v779 = vsel %vm777, %v774, %v776
    %v782 = vsel %vm649, %v778, 0.0
    %v783 = vsel %vm650, %v779, 0.0
    %784 = vset.pattern.permute.xlu0 15
    %785 = vperm.xlu0 %784, %v306
    %v786 = vpop.permute.xlu0 %785
    %v788 = vmul.f32 %v782, %v786
    %v789 = vmul.f32 %v783, %v786
    %v790 = vadd.f32 %v769, %v788
    %v791 = vadd.f32 %v770, %v789
    %792 = vset.pattern.permute.xlu0 16
    %793 = vperm.xlu0 %792, %v306
    %v794 = vpop.permute.xlu0 %793
    %v796 = vmul.f32 %v447, %v794
    %v797 = vmul.f32 %v448, %v794
    %v798 = vmul.f32 %v449, %v794
    %802 = vrot.lane.b32.xlu0 %v796, 96
    %v803 = vpop.permute.xlu0 %802
    %804 = vrot.lane.b32.xlu0 %v797, 96
    %v805 = vpop.permute.xlu0 %804
    %806 = vrot.lane.b32.xlu0 %v798, 96
    %v807 = vpop.permute.xlu0 %806
    %vm808 = vcmask 785408
    %v809 = vsel %vm808, %v803, %v805
    %v810 = vsel %vm808, %v805, %v807
    %v813 = vadd.f32 %v790, %v809
    %v814 = vadd.f32 %v791, %v810
    %815 = vrot.lane.b32.xlu0 %v447, 94
    %v816 = vpop.permute.xlu0 %815
    %817 = vrot.lane.b32.xlu0 %v448, 94
    %v818 = vpop.permute.xlu0 %817
    %819 = vrot.lane.b32.xlu0 %v449, 94
    %v820 = vpop.permute.xlu0 %819
    %vm821 = vcmask 769024
    %v822 = vsel %vm821, %v816, %v818
    %v823 = vsel %vm821, %v818, %v820
    %v826 = vsel %vm698, %v822, 0.0
    %v827 = vsel %vm699, %v823, 0.0
    %828 = vset.pattern.permute.xlu0 17
    %829 = vperm.xlu0 %828, %v306
    %v830 = vpop.permute.xlu0 %829
    %v832 = vmul.f32 %v826, %v830
    %v833 = vmul.f32 %v827, %v830
    %v834 = vadd.f32 %v813, %v832
    %v835 = vadd.f32 %v814, %v833
    %836 = vset.pattern.permute.xlu0 1
    %837 = vperm.xlu0 %836, %v588
    %v838 = vpop.permute.xlu0 %837
    %v840 = vmul.f32 %v834, %v838
    %v841 = vmul.f32 %v835, %v838
    %842 = vset.pattern.permute.xlu0 1
    %843 = vperm.xlu0 %842, %v596
    %v844 = vpop.permute.xlu0 %843
    %v846 = vadd.f32 %v840, %v844
    %v847 = vadd.f32 %v841, %v844
    %v848 = vxor.u32 %v846, 2147483648
    %v849 = vxor.u32 %v847, 2147483648
    %v850 = vmul.f32 %v848, 1.442695
    %v851 = vpow.pop %v850
    %v852 = vmul.f32 %v849, 1.442695
    %v853 = vpow.pop %v852
    %v854 = vadd.f32 %v851, 1.0
    %v855 = vadd.f32 %v853, 1.0
    %v856 = vrcp.pop %v854
    %v857 = vmul.f32 %v854, %v856
    %v858 = vsub.f32 1.0, %v857
    %v859 = vmul.f32 %v856, %v858
    %v860 = vadd.f32 %v856, %v859
    %vm861 = vweird.f32 %v854
    %vm862 = vweird.f32 %v856
    %vm863 = vmor %vm861, %vm862
    %v864 = vsel %vm863, %v856, %v860
    %v865 = vand.u32 2147483647, %v854
    %vm866 = vcmp.eq.f32.partialorder %v865, 8.507059e+37
    %v867 = vand.u32 %v854, 2147483648
    %v868 = vor.u32 1.1754944e-38, %v867
    %v869 = vsel %vm866, %v868, %v864
    %v870 = vmul.f32 1.0, %v869
    %v871 = vrcp.pop %v855
    %v872 = vmul.f32 %v855, %v871
    %v873 = vsub.f32 1.0, %v872
    %v874 = vmul.f32 %v871, %v873
    %v875 = vadd.f32 %v871, %v874
    %vm876 = vweird.f32 %v855
    %vm877 = vweird.f32 %v871
    %vm878 = vmor %vm876, %vm877
    %v879 = vsel %vm878, %v871, %v875
    %v880 = vand.u32 2147483647, %v855
    %vm881 = vcmp.eq.f32.partialorder %v880, 8.507059e+37
    %v882 = vand.u32 %v855, 2147483648
    %v883 = vor.u32 1.1754944e-38, %v882
    %v884 = vsel %vm881, %v883, %v879
    %v885 = vmul.f32 1.0, %v884
    %v886 = vmul.f32 %v846, %v870
    %v887 = vmul.f32 %v847, %v885
    %v888 = vadd.f32 %v644, %v886
    %v889 = vadd.f32 %v645, %v887
    %v890 = vsel %vm275, 1, 0
    %v891 = vperm.slane %v890, 0
    %v892 = vperm.slane %v890, 1
    %vm893 = vcmp.eq.s32.totalorder %v891, 1
    %vm894 = vcmp.eq.s32.totalorder %v892, 1
    %895 = vrot.lane.b32.xlu0 %v282, 51
    %v896 = vpop.permute.xlu0 %895
    %897 = vrot.lane.b32.xlu0 %v283, 51
    %v898 = vpop.permute.xlu0 %897
    %899 = vrot.lane.b32.xlu0 %v284, 51
    %v900 = vpop.permute.xlu0 %899
    %vm901 = vcmask 416768
    %v902 = vsel %vm901, %v896, %v898
    %v903 = vsel %vm901, %v898, %v900
    %v906 = vsel %vm893, %v902, 0.0
    %v907 = vsel %vm894, %v903, 0.0
    %908 = vset.pattern.permute.xlu0 18
    %909 = vperm.xlu0 %908, %v306
    %v910 = vpop.permute.xlu0 %909
    %v912 = vmul.f32 %v906, %v910
    %v913 = vmul.f32 %v907, %v910
    %v914 = vadd.f32 %v912, 0.0
    %v915 = vadd.f32 %v913, 0.0
    %916 = vset.pattern.permute.xlu0 19
    %917 = vperm.xlu0 %916, %v306
    %v918 = vpop.permute.xlu0 %917
    %v920 = vmul.f32 %v282, %v918
    %v921 = vmul.f32 %v283, %v918
    %v922 = vmul.f32 %v284, %v918
    %926 = vrot.lane.b32.xlu0 %v920, 48
    %v927 = vpop.permute.xlu0 %926
    %928 = vrot.lane.b32.xlu0 %v921, 48
    %v929 = vpop.permute.xlu0 %928
    %930 = vrot.lane.b32.xlu0 %v922, 48
    %v931 = vpop.permute.xlu0 %930
    %vm932 = vcmask 392192
    %v933 = vsel %vm932, %v927, %v929
    %v934 = vsel %vm932, %v929, %v931
    %v937 = vadd.f32 %v914, %v933
    %v938 = vadd.f32 %v915, %v934
    %v939 = vsel %vm274, 1, 0
    %v940 = vperm.slane %v939, 0
    %v941 = vperm.slane %v939, 1
    %vm942 = vcmp.eq.s32.totalorder %v940, 1
    %vm943 = vcmp.eq.s32.totalorder %v941, 1
    %944 = vrot.lane.b32.xlu0 %v282, 45
    %v945 = vpop.permute.xlu0 %944
    %946 = vrot.lane.b32.xlu0 %v283, 45
    %v947 = vpop.permute.xlu0 %946
    %948 = vrot.lane.b32.xlu0 %v284, 45
    %v949 = vpop.permute.xlu0 %948
    %vm950 = vcmask 367616
    %v951 = vsel %vm950, %v945, %v947
    %v952 = vsel %vm950, %v947, %v949
    %v955 = vsel %vm942, %v951, 0.0
    %v956 = vsel %vm943, %v952, 0.0
    %957 = vset.pattern.permute.xlu0 20
    %958 = vperm.xlu0 %957, %v306
    %v959 = vpop.permute.xlu0 %958
    %v961 = vmul.f32 %v955, %v959
    %v962 = vmul.f32 %v956, %v959
    %v963 = vadd.f32 %v937, %v961
    %v964 = vadd.f32 %v938, %v962
    %965 = vrot.lane.b32.xlu0 %v282, 3
    %v966 = vpop.permute.xlu0 %965
    %967 = vrot.lane.b32.xlu0 %v283, 3
    %v968 = vpop.permute.xlu0 %967
    %969 = vrot.lane.b32.xlu0 %v284, 3
    %v970 = vpop.permute.xlu0 %969
    %vm971 = vcmask 23552
    %v972 = vsel %vm971, %v966, %v968
    %v973 = vsel %vm971, %v968, %v970
    %v976 = vsel %vm893, %v972, 0.0
    %v977 = vsel %vm894, %v973, 0.0
    %978 = vset.pattern.permute.xlu0 21
    %979 = vperm.xlu0 %978, %v306
    %v980 = vpop.permute.xlu0 %979
    %v982 = vmul.f32 %v976, %v980
    %v983 = vmul.f32 %v977, %v980
    %v984 = vadd.f32 %v963, %v982
    %v985 = vadd.f32 %v964, %v983
    %986 = vset.pattern.permute.xlu0 22
    %987 = vperm.xlu0 %986, %v306
    %v988 = vpop.permute.xlu0 %987
    %v990 = vmul.f32 %v283, %v988
    %v991 = vmul.f32 %v284, %v988
    %v992 = vadd.f32 %v984, %v990
    %v993 = vadd.f32 %v985, %v991
    %994 = vrot.lane.b32.xlu0 %v447, 125
    %v995 = vpop.permute.xlu0 %994
    %996 = vrot.lane.b32.xlu0 %v448, 125
    %v997 = vpop.permute.xlu0 %996
    %998 = vrot.lane.b32.xlu0 %v449, 125
    %v999 = vpop.permute.xlu0 %998
    %vm1000 = vcmask 1022976
    %v1001 = vsel %vm1000, %v995, %v997
    %v1002 = vsel %vm1000, %v997, %v999
    %v1005 = vsel %vm942, %v1001, 0.0
    %v1006 = vsel %vm943, %v1002, 0.0
    %1007 = vset.pattern.permute.xlu0 23
    %1008 = vperm.xlu0 %1007, %v306
    %v1009 = vpop.permute.xlu0 %1008
    %v1011 = vmul.f32 %v1005, %v1009
    %v1012 = vmul.f32 %v1006, %v1009
    %v1013 = vadd.f32 %v992, %v1011
    %v1014 = vadd.f32 %v993, %v1012
    %1015 = vrot.lane.b32.xlu0 %v447, 83
    %v1016 = vpop.permute.xlu0 %1015
    %1017 = vrot.lane.b32.xlu0 %v448, 83
    %v1018 = vpop.permute.xlu0 %1017
    %1019 = vrot.lane.b32.xlu0 %v449, 83
    %v1020 = vpop.permute.xlu0 %1019
    %vm1021 = vcmask 678912
    %v1022 = vsel %vm1021, %v1016, %v1018
    %v1023 = vsel %vm1021, %v1018, %v1020
    %v1026 = vsel %vm893, %v1022, 0.0
    %v1027 = vsel %vm894, %v1023, 0.0
    %1028 = vset.pattern.permute.xlu0 24
    %1029 = vperm.xlu0 %1028, %v306
    %v1030 = vpop.permute.xlu0 %1029
    %v1032 = vmul.f32 %v1026, %v1030
    %v1033 = vmul.f32 %v1027, %v1030
    %v1034 = vadd.f32 %v1013, %v1032
    %v1035 = vadd.f32 %v1014, %v1033
    %1036 = vset.pattern.permute.xlu0 25
    %1037 = vperm.xlu0 %1036, %v306
    %v1038 = vpop.permute.xlu0 %1037
    %v1040 = vmul.f32 %v447, %v1038
    %v1041 = vmul.f32 %v448, %v1038
    %v1042 = vmul.f32 %v449, %v1038
    %1046 = vrot.lane.b32.xlu0 %v1040, 80
    %v1047 = vpop.permute.xlu0 %1046
    %1048 = vrot.lane.b32.xlu0 %v1041, 80
    %v1049 = vpop.permute.xlu0 %1048
    %1050 = vrot.lane.b32.xlu0 %v1042, 80
    %v1051 = vpop.permute.xlu0 %1050
    %vm1052 = vcmask 654336
    %v1053 = vsel %vm1052, %v1047, %v1049
    %v1054 = vsel %vm1052, %v1049, %v1051
    %v1057 = vadd.f32 %v1034, %v1053
    %v1058 = vadd.f32 %v1035, %v1054
    %1059 = vrot.lane.b32.xlu0 %v447, 77
    %v1060 = vpop.permute.xlu0 %1059
    %1061 = vrot.lane.b32.xlu0 %v448, 77
    %v1062 = vpop.permute.xlu0 %1061
    %1063 = vrot.lane.b32.xlu0 %v449, 77
    %v1064 = vpop.permute.xlu0 %1063
    %vm1065 = vcmask 629760
    %v1066 = vsel %vm1065, %v1060, %v1062
    %v1067 = vsel %vm1065, %v1062, %v1064
    %v1070 = vsel %vm942, %v1066, 0.0
    %v1071 = vsel %vm943, %v1067, 0.0
    %1072 = vset.pattern.permute.xlu0 26
    %1073 = vperm.xlu0 %1072, %v306
    %v1074 = vpop.permute.xlu0 %1073
    %v1076 = vmul.f32 %v1070, %v1074
    %v1077 = vmul.f32 %v1071, %v1074
    %v1078 = vadd.f32 %v1057, %v1076
    %v1079 = vadd.f32 %v1058, %v1077
    %1080 = vset.pattern.permute.xlu0 2
    %1081 = vperm.xlu0 %1080, %v588
    %v1082 = vpop.permute.xlu0 %1081
    %v1084 = vmul.f32 %v1078, %v1082
    %v1085 = vmul.f32 %v1079, %v1082
    %1086 = vset.pattern.permute.xlu0 2
    %1087 = vperm.xlu0 %1086, %v596
    %v1088 = vpop.permute.xlu0 %1087
    %v1090 = vadd.f32 %v1084, %v1088
    %v1091 = vadd.f32 %v1085, %v1088
    %v1092 = vxor.u32 %v1090, 2147483648
    %v1093 = vxor.u32 %v1091, 2147483648
    %v1094 = vmul.f32 %v1092, 1.442695
    %v1095 = vpow.pop %v1094
    %v1096 = vmul.f32 %v1093, 1.442695
    %v1097 = vpow.pop %v1096
    %v1098 = vadd.f32 %v1095, 1.0
    %v1099 = vadd.f32 %v1097, 1.0
    %v1100 = vrcp.pop %v1098
    %v1101 = vmul.f32 %v1098, %v1100
    %v1102 = vsub.f32 1.0, %v1101
    %v1103 = vmul.f32 %v1100, %v1102
    %v1104 = vadd.f32 %v1100, %v1103
    %vm1105 = vweird.f32 %v1098
    %vm1106 = vweird.f32 %v1100
    %vm1107 = vmor %vm1105, %vm1106
    %v1108 = vsel %vm1107, %v1100, %v1104
    %v1109 = vand.u32 2147483647, %v1098
    %vm1110 = vcmp.eq.f32.partialorder %v1109, 8.507059e+37
    %v1111 = vand.u32 %v1098, 2147483648
    %v1112 = vor.u32 1.1754944e-38, %v1111
    %v1113 = vsel %vm1110, %v1112, %v1108
    %v1114 = vmul.f32 1.0, %v1113
    %v1115 = vrcp.pop %v1099
    %v1116 = vmul.f32 %v1099, %v1115
    %v1117 = vsub.f32 1.0, %v1116
    %v1118 = vmul.f32 %v1115, %v1117
    %v1119 = vadd.f32 %v1115, %v1118
    %vm1120 = vweird.f32 %v1099
    %vm1121 = vweird.f32 %v1115
    %vm1122 = vmor %vm1120, %vm1121
    %v1123 = vsel %vm1122, %v1115, %v1119
    %v1124 = vand.u32 2147483647, %v1099
    %vm1125 = vcmp.eq.f32.partialorder %v1124, 8.507059e+37
    %v1126 = vand.u32 %v1099, 2147483648
    %v1127 = vor.u32 1.1754944e-38, %v1126
    %v1128 = vsel %vm1125, %v1127, %v1123
    %v1129 = vmul.f32 1.0, %v1128
    %v1130 = vmul.f32 %v1090, %v1114
    %v1131 = vmul.f32 %v1091, %v1129
    %v1132 = vadd.f32 %v888, %v1130
    %v1133 = vadd.f32 %v889, %v1131
    %v1134 = vadd.f32 %v1132, %v586
    %v1135 = vadd.f32 %v1133, %v587
    %v1136 = vmul.f32 %v577, 0.11111111
    %v1137 = vmul.f32 %v578, 0.11111111
    %v1138 = vadd.f32 %v1134, %v1136
    %v1139 = vadd.f32 %v1135, %v1137
    %v1140 = vld [vmem:[%s5] sm:$0xff]
    %v1141 = vld [vmem:[%s5 + $0x8] sm:$0xff]
    %v1142 = vperm.slane %v1138, 0
    %v1143 = vperm.slane %v1139, 0
    %1145 = vset.pattern.permute.xlu0 0
    %1146 = vperm.xlu0 %1145, %v1140
    %v1147 = vpop.permute.xlu0 %1146
    %1150 = vset.pattern.permute.xlu0 0
    %1151 = vperm.xlu0 %1150, %v1141
    %v1152 = vpop.permute.xlu0 %1151
    %v1154 = vmul.f32 %v1142, %v1147
    %v1155 = vmul.f32 %v1143, %v1147
    %v1156 = vmul.f32 %v1142, %v1152
    %v1157 = vmul.f32 %v1143, %v1152
    %v1158 = vperm.slane %v1138, 1
    %v1159 = vperm.slane %v1139, 1
    %1160 = vset.pattern.permute.xlu0 1
    %1161 = vperm.xlu0 %1160, %v1140
    %v1162 = vpop.permute.xlu0 %1161
    %1164 = vset.pattern.permute.xlu0 1
    %1165 = vperm.xlu0 %1164, %v1141
    %v1166 = vpop.permute.xlu0 %1165
    %v1168 = vmul.f32 %v1158, %v1162
    %v1169 = vmul.f32 %v1159, %v1162
    %v1170 = vmul.f32 %v1158, %v1166
    %v1171 = vmul.f32 %v1159, %v1166
    %v1172 = vperm.slane %v1138, 2
    %v1173 = vperm.slane %v1139, 2
    %1174 = vset.pattern.permute.xlu0 2
    %1175 = vperm.xlu0 %1174, %v1140
    %v1176 = vpop.permute.xlu0 %1175
    %1178 = vset.pattern.permute.xlu0 2
    %1179 = vperm.xlu0 %1178, %v1141
    %v1180 = vpop.permute.xlu0 %1179
    %v1182 = vmul.f32 %v1172, %v1176
    %v1183 = vmul.f32 %v1173, %v1176
    %v1184 = vmul.f32 %v1172, %v1180
    %v1185 = vmul.f32 %v1173, %v1180
    %v1186 = vadd.f32 %v1154, %v1182
    %v1187 = vadd.f32 %v1155, %v1183
    %v1188 = vadd.f32 %v1156, %v1184
    %v1189 = vadd.f32 %v1157, %v1185
    %v1190 = vperm.slane %v1138, 3
    %v1191 = vperm.slane %v1139, 3
    %1192 = vset.pattern.permute.xlu0 3
    %1193 = vperm.xlu0 %1192, %v1140
    %v1194 = vpop.permute.xlu0 %1193
    %1196 = vset.pattern.permute.xlu0 3
    %1197 = vperm.xlu0 %1196, %v1141
    %v1198 = vpop.permute.xlu0 %1197
    %v1200 = vmul.f32 %v1190, %v1194
    %v1201 = vmul.f32 %v1191, %v1194
    %v1202 = vmul.f32 %v1190, %v1198
    %v1203 = vmul.f32 %v1191, %v1198
    %v1204 = vadd.f32 %v1168, %v1200
    %v1205 = vadd.f32 %v1169, %v1201
    %v1206 = vadd.f32 %v1170, %v1202
    %v1207 = vadd.f32 %v1171, %v1203
    %v1208 = vperm.slane %v1138, 4
    %v1209 = vperm.slane %v1139, 4
    %1210 = vset.pattern.permute.xlu0 4
    %1211 = vperm.xlu0 %1210, %v1140
    %v1212 = vpop.permute.xlu0 %1211
    %1214 = vset.pattern.permute.xlu0 4
    %1215 = vperm.xlu0 %1214, %v1141
    %v1216 = vpop.permute.xlu0 %1215
    %v1218 = vmul.f32 %v1208, %v1212
    %v1219 = vmul.f32 %v1209, %v1212
    %v1220 = vmul.f32 %v1208, %v1216
    %v1221 = vmul.f32 %v1209, %v1216
    %v1222 = vadd.f32 %v1186, %v1218
    %v1223 = vadd.f32 %v1187, %v1219
    %v1224 = vadd.f32 %v1188, %v1220
    %v1225 = vadd.f32 %v1189, %v1221
    %v1226 = vperm.slane %v1138, 5
    %v1227 = vperm.slane %v1139, 5
    %1228 = vset.pattern.permute.xlu0 5
    %1229 = vperm.xlu0 %1228, %v1140
    %v1230 = vpop.permute.xlu0 %1229
    %1232 = vset.pattern.permute.xlu0 5
    %1233 = vperm.xlu0 %1232, %v1141
    %v1234 = vpop.permute.xlu0 %1233
    %v1236 = vmul.f32 %v1226, %v1230
    %v1237 = vmul.f32 %v1227, %v1230
    %v1238 = vmul.f32 %v1226, %v1234
    %v1239 = vmul.f32 %v1227, %v1234
    %v1240 = vadd.f32 %v1204, %v1236
    %v1241 = vadd.f32 %v1205, %v1237
    %v1242 = vadd.f32 %v1206, %v1238
    %v1243 = vadd.f32 %v1207, %v1239
    %v1244 = vperm.slane %v1138, 6
    %v1245 = vperm.slane %v1139, 6
    %1246 = vset.pattern.permute.xlu0 6
    %1247 = vperm.xlu0 %1246, %v1140
    %v1248 = vpop.permute.xlu0 %1247
    %1250 = vset.pattern.permute.xlu0 6
    %1251 = vperm.xlu0 %1250, %v1141
    %v1252 = vpop.permute.xlu0 %1251
    %v1254 = vmul.f32 %v1244, %v1248
    %v1255 = vmul.f32 %v1245, %v1248
    %v1256 = vmul.f32 %v1244, %v1252
    %v1257 = vmul.f32 %v1245, %v1252
    %v1258 = vadd.f32 %v1222, %v1254
    %v1259 = vadd.f32 %v1223, %v1255
    %v1260 = vadd.f32 %v1224, %v1256
    %v1261 = vadd.f32 %v1225, %v1257
    %v1262 = vperm.slane %v1138, 7
    %v1263 = vperm.slane %v1139, 7
    %1264 = vset.pattern.permute.xlu0 7
    %1265 = vperm.xlu0 %1264, %v1140
    %v1266 = vpop.permute.xlu0 %1265
    %1268 = vset.pattern.permute.xlu0 7
    %1269 = vperm.xlu0 %1268, %v1141
    %v1270 = vpop.permute.xlu0 %1269
    %v1272 = vmul.f32 %v1262, %v1266
    %v1273 = vmul.f32 %v1263, %v1266
    %v1274 = vmul.f32 %v1262, %v1270
    %v1275 = vmul.f32 %v1263, %v1270
    %v1276 = vadd.f32 %v1240, %v1272
    %v1277 = vadd.f32 %v1241, %v1273
    %v1278 = vadd.f32 %v1242, %v1274
    %v1279 = vadd.f32 %v1243, %v1275
    %v1280 = vadd.f32 %v1258, %v1276
    %v1281 = vadd.f32 %v1259, %v1277
    %v1282 = vadd.f32 %v1260, %v1278
    %v1283 = vadd.f32 %v1261, %v1279
    %v1284 = vld [vmem:[%s10] sm:$0xff]
    %v1285 = vld [vmem:[%s10 + $0x8] sm:$0xff]
    %1287 = vset.pattern.permute.xlu0 0
    %1288 = vperm.xlu0 %1287, %v1284
    %v1289 = vpop.permute.xlu0 %1288
    %1292 = vset.pattern.permute.xlu0 0
    %1293 = vperm.xlu0 %1292, %v1285
    %v1294 = vpop.permute.xlu0 %1293
    %v1296 = vmul.f32 %v1280, %v1289
    %v1297 = vmul.f32 %v1281, %v1289
    %v1298 = vmul.f32 %v1282, %v1294
    %v1299 = vmul.f32 %v1283, %v1294
    %v1300 = vld [vmem:[%s11] sm:$0xff]
    %v1301 = vld [vmem:[%s11 + $0x8] sm:$0xff]
    %1303 = vset.pattern.permute.xlu0 0
    %1304 = vperm.xlu0 %1303, %v1300
    %v1305 = vpop.permute.xlu0 %1304
    %1308 = vset.pattern.permute.xlu0 0
    %1309 = vperm.xlu0 %1308, %v1301
    %v1310 = vpop.permute.xlu0 %1309
    %v1312 = vadd.f32 %v1296, %v1305
    %v1313 = vadd.f32 %v1297, %v1305
    %v1314 = vadd.f32 %v1298, %v1310
    %v1315 = vadd.f32 %v1299, %v1310
    %v1316 = vxor.u32 %v1312, 2147483648
    %v1317 = vxor.u32 %v1313, 2147483648
    %v1318 = vxor.u32 %v1314, 2147483648
    %v1319 = vxor.u32 %v1315, 2147483648
    %v1320 = vmul.f32 %v1316, 1.442695
    %v1321 = vpow.pop %v1320
    %v1322 = vmul.f32 %v1317, 1.442695
    %v1323 = vpow.pop %v1322
    %v1324 = vmul.f32 %v1318, 1.442695
    %v1325 = vpow.pop %v1324
    %v1326 = vmul.f32 %v1319, 1.442695
    %v1327 = vpow.pop %v1326
    %v1328 = vadd.f32 %v1321, 1.0
    %v1329 = vadd.f32 %v1323, 1.0
    %v1330 = vadd.f32 %v1325, 1.0
    %v1331 = vadd.f32 %v1327, 1.0
    %v1332 = vrcp.pop %v1328
    %v1333 = vmul.f32 %v1328, %v1332
    %v1334 = vsub.f32 1.0, %v1333
    %v1335 = vmul.f32 %v1332, %v1334
    %v1336 = vadd.f32 %v1332, %v1335
    %vm1337 = vweird.f32 %v1328
    %vm1338 = vweird.f32 %v1332
    %vm1339 = vmor %vm1337, %vm1338
    %v1340 = vsel %vm1339, %v1332, %v1336
    %v1341 = vand.u32 2147483647, %v1328
    %vm1342 = vcmp.eq.f32.partialorder %v1341, 8.507059e+37
    %v1343 = vand.u32 %v1328, 2147483648
    %v1344 = vor.u32 1.1754944e-38, %v1343
    %v1345 = vsel %vm1342, %v1344, %v1340
    %v1346 = vmul.f32 1.0, %v1345
    %v1347 = vrcp.pop %v1329
    %v1348 = vmul.f32 %v1329, %v1347
    %v1349 = vsub.f32 1.0, %v1348
    %v1350 = vmul.f32 %v1347, %v1349
    %v1351 = vadd.f32 %v1347, %v1350
    %vm1352 = vweird.f32 %v1329
    %vm1353 = vweird.f32 %v1347
    %vm1354 = vmor %vm1352, %vm1353
    %v1355 = vsel %vm1354, %v1347, %v1351
    %v1356 = vand.u32 2147483647, %v1329
    %vm1357 = vcmp.eq.f32.partialorder %v1356, 8.507059e+37
    %v1358 = vand.u32 %v1329, 2147483648
    %v1359 = vor.u32 1.1754944e-38, %v1358
    %v1360 = vsel %vm1357, %v1359, %v1355
    %v1361 = vmul.f32 1.0, %v1360
    %v1362 = vrcp.pop %v1330
    %v1363 = vmul.f32 %v1330, %v1362
    %v1364 = vsub.f32 1.0, %v1363
    %v1365 = vmul.f32 %v1362, %v1364
    %v1366 = vadd.f32 %v1362, %v1365
    %vm1367 = vweird.f32 %v1330
    %vm1368 = vweird.f32 %v1362
    %vm1369 = vmor %vm1367, %vm1368
    %v1370 = vsel %vm1369, %v1362, %v1366
    %v1371 = vand.u32 2147483647, %v1330
    %vm1372 = vcmp.eq.f32.partialorder %v1371, 8.507059e+37
    %v1373 = vand.u32 %v1330, 2147483648
    %v1374 = vor.u32 1.1754944e-38, %v1373
    %v1375 = vsel %vm1372, %v1374, %v1370
    %v1376 = vmul.f32 1.0, %v1375
    %v1377 = vrcp.pop %v1331
    %v1378 = vmul.f32 %v1331, %v1377
    %v1379 = vsub.f32 1.0, %v1378
    %v1380 = vmul.f32 %v1377, %v1379
    %v1381 = vadd.f32 %v1377, %v1380
    %vm1382 = vweird.f32 %v1331
    %vm1383 = vweird.f32 %v1377
    %vm1384 = vmor %vm1382, %vm1383
    %v1385 = vsel %vm1384, %v1377, %v1381
    %v1386 = vand.u32 2147483647, %v1331
    %vm1387 = vcmp.eq.f32.partialorder %v1386, 8.507059e+37
    %v1388 = vand.u32 %v1331, 2147483648
    %v1389 = vor.u32 1.1754944e-38, %v1388
    %v1390 = vsel %vm1387, %v1389, %v1385
    %v1391 = vmul.f32 1.0, %v1390
    %v1392 = vmul.f32 %v1312, %v1346
    %v1393 = vmul.f32 %v1313, %v1361
    %v1394 = vmul.f32 %v1314, %v1376
    %v1395 = vmul.f32 %v1315, %v1391
    %v1396 = vxor.u32 %v1392, 2147483648
    %v1397 = vxor.u32 %v1393, 2147483648
    %v1398 = vxor.u32 %v1394, 2147483648
    %v1399 = vxor.u32 %v1395, 2147483648
    %v1400 = vmul.f32 %v1396, 1.442695
    %v1401 = vpow.pop %v1400
    %v1402 = vmul.f32 %v1397, 1.442695
    %v1403 = vpow.pop %v1402
    %v1404 = vmul.f32 %v1398, 1.442695
    %v1405 = vpow.pop %v1404
    %v1406 = vmul.f32 %v1399, 1.442695
    %v1407 = vpow.pop %v1406
    %v1408 = vadd.f32 %v1401, 1.0
    %v1409 = vadd.f32 %v1403, 1.0
    %v1410 = vadd.f32 %v1405, 1.0
    %v1411 = vadd.f32 %v1407, 1.0
    %v1412 = vrcp.pop %v1408
    %v1413 = vmul.f32 %v1408, %v1412
    %v1414 = vsub.f32 1.0, %v1413
    %v1415 = vmul.f32 %v1412, %v1414
    %v1416 = vadd.f32 %v1412, %v1415
    %vm1417 = vweird.f32 %v1408
    %vm1418 = vweird.f32 %v1412
    %vm1419 = vmor %vm1417, %vm1418
    %v1420 = vsel %vm1419, %v1412, %v1416
    %v1421 = vand.u32 2147483647, %v1408
    %vm1422 = vcmp.eq.f32.partialorder %v1421, 8.507059e+37
    %v1423 = vand.u32 %v1408, 2147483648
    %v1424 = vor.u32 1.1754944e-38, %v1423
    %v1425 = vsel %vm1422, %v1424, %v1420
    %v1426 = vmul.f32 1.0, %v1425
    %v1427 = vrcp.pop %v1409
    %v1428 = vmul.f32 %v1409, %v1427
    %v1429 = vsub.f32 1.0, %v1428
    %v1430 = vmul.f32 %v1427, %v1429
    %v1431 = vadd.f32 %v1427, %v1430
    %vm1432 = vweird.f32 %v1409
    %vm1433 = vweird.f32 %v1427
    %vm1434 = vmor %vm1432, %vm1433
    %v1435 = vsel %vm1434, %v1427, %v1431
    %v1436 = vand.u32 2147483647, %v1409
    %vm1437 = vcmp.eq.f32.partialorder %v1436, 8.507059e+37
    %v1438 = vand.u32 %v1409, 2147483648
    %v1439 = vor.u32 1.1754944e-38, %v1438
    %v1440 = vsel %vm1437, %v1439, %v1435
    %v1441 = vmul.f32 1.0, %v1440
    %v1442 = vrcp.pop %v1410
    %v1443 = vmul.f32 %v1410, %v1442
    %v1444 = vsub.f32 1.0, %v1443
    %v1445 = vmul.f32 %v1442, %v1444
    %v1446 = vadd.f32 %v1442, %v1445
    %vm1447 = vweird.f32 %v1410
    %vm1448 = vweird.f32 %v1442
    %vm1449 = vmor %vm1447, %vm1448
    %v1450 = vsel %vm1449, %v1442, %v1446
    %v1451 = vand.u32 2147483647, %v1410
    %vm1452 = vcmp.eq.f32.partialorder %v1451, 8.507059e+37
    %v1453 = vand.u32 %v1410, 2147483648
    %v1454 = vor.u32 1.1754944e-38, %v1453
    %v1455 = vsel %vm1452, %v1454, %v1450
    %v1456 = vmul.f32 1.0, %v1455
    %v1457 = vrcp.pop %v1411
    %v1458 = vmul.f32 %v1411, %v1457
    %v1459 = vsub.f32 1.0, %v1458
    %v1460 = vmul.f32 %v1457, %v1459
    %v1461 = vadd.f32 %v1457, %v1460
    %vm1462 = vweird.f32 %v1411
    %vm1463 = vweird.f32 %v1457
    %vm1464 = vmor %vm1462, %vm1463
    %v1465 = vsel %vm1464, %v1457, %v1461
    %v1466 = vand.u32 2147483647, %v1411
    %vm1467 = vcmp.eq.f32.partialorder %v1466, 8.507059e+37
    %v1468 = vand.u32 %v1411, 2147483648
    %v1469 = vor.u32 1.1754944e-38, %v1468
    %v1470 = vsel %vm1467, %v1469, %v1465
    %v1471 = vmul.f32 1.0, %v1470
    %v1472 = vld [vmem:[%s0] sm:$0xff]
    %v1473 = vld [vmem:[%s0 + $0x8] sm:$0xff]
    %v1474 = vld [vmem:[%s0 + $0x10] sm:$0xff]
    %v1475 = vld [vmem:[%s0 + $0x18] sm:$0xff]
    %v1476 = vadd.f32 %v1426, 1.0
    %v1477 = vadd.f32 %v1441, 1.0
    %v1478 = vadd.f32 %v1456, 1.0
    %v1479 = vadd.f32 %v1471, 1.0
    %v1480 = vmul.f32 %v1476, %v1472
    %v1481 = vmul.f32 %v1477, %v1473
    %v1482 = vmul.f32 %v1478, %v1474
    %v1483 = vmul.f32 %v1479, %v1475
    %1484 = vst [vmem:[#allocation3] sm:$0xff] %v1480
    %1485 = vst [vmem:[#allocation3 + $0x8] sm:$0xff] %v1481
    %1486 = vst [vmem:[#allocation3 + $0x10] sm:$0xff] %v1482
    %1487 = vst [vmem:[#allocation3 + $0x18] sm:$0xff] %v1483
    // Predicated region
    $region50: #{tpu_custom_call.1} parent=1 // pred_check
      _
    $region51: #{tpu_custom_call.1} parent=1 // pred_check_branch
      %1489 = sbr.rel (0) target = $region53
    $region52: #{tpu_custom_call.1} parent=1 // pred_region
      %1491 = vsyncadd [#allocation4], 0
      %s1492 = sshll.u32 [#allocation3], 4
      %s1493 = int_to_ptr.vmem [resolvable:$true] %s1492
      %s1494 = sshll.u32 %s12, 4
      %s1495 = int_to_ptr.hbm [resolvable:$true] %s1494
      %1500 = dma.vmem_to_hbm [thread:$0]  %s1493, 512, %s1495, [#allocation4], 256, 256, 16
    $region53: #{tpu_custom_call.1} parent=1 // pred_fallthru
      _
    // Predicated region
    $region54: #{tpu_custom_call.1} parent=1 // pred_check
      _
    $region55: #{tpu_custom_call.1} parent=1 // pred_check_branch
      %1502 = sbr.rel (0) target = $region57
    $region56: #{tpu_custom_call.1} parent=1 // pred_region
      %1504 = dma.done [#allocation4], 512
    $region57: #{tpu_custom_call.1} parent=1 // pred_fallthru
      _
    %1505 = vsyncpa [#allocation4], 1

</llo_original>
